<compile_context>
chip_gen: v5e
topology: v5e:2x2
jax: 0.10.0
libtpu: 0.0.40
codegen_flags: <defaults>
</compile_context>

<pallas_src>
import functools

import jax
import jax.numpy as jnp
from jax import lax
from jax.experimental import pallas as pl
from jax.experimental.pallas import tpu as pltpu

_NEG_INF = -1e30


def _asp_kernel(x_ref, w1_ref, b1_ref, w2_ref, o_ref,
                m_ref, l_ref, s1_ref, s2_ref, *, seq_len, num_t):
    t = pl.program_id(1)
    C = o_ref.shape[1] // 2
    TT = x_ref.shape[2]
    last = num_t - 1
    needs_mask = (num_t * TT != seq_len)      # static (trace-time) decision

    @pl.when(t == 0)
    def _():
        m_ref[...] = jnp.full_like(m_ref, _NEG_INF)
        l_ref[...] = jnp.zeros_like(l_ref)
        s1_ref[...] = jnp.zeros_like(s1_ref)
        s2_ref[...] = jnp.zeros_like(s2_ref)

    x_nat = x_ref[0]                          # (C, TT), native dtype (bf16 fast path)
    x_f32 = x_nat.astype(jnp.float32)         # f32 only for the moment products

    # 1x1 convs as MXU matmuls: native-dtype operands, f32 accumulation.
    a = jnp.tanh(jnp.dot(w1_ref[...], x_nat, preferred_element_type=jnp.float32)
                 + b1_ref[...])               # (A, TT), f32
    # linear2 bias intentionally dropped: softmax over T is invariant to a
    # per-channel constant, so b2 cannot change the output.
    e = jnp.dot(w2_ref[...], a.astype(w2_ref.dtype),
                preferred_element_type=jnp.float32)          # (C, TT), f32

    def _update(e_blk):
        # Online softmax over T fused with the alpha-weighted moments.
        m_old = m_ref[...]
        m_new = jnp.maximum(m_old, jnp.max(e_blk, axis=-1, keepdims=True))
        scale = jnp.exp(m_old - m_new)
        p = jnp.exp(e_blk - m_new)            # unnormalized alpha
        px = p * x_f32
        l_ref[...] = scale * l_ref[...] + jnp.sum(p, axis=-1, keepdims=True)
        s1_ref[...] = scale * s1_ref[...] + jnp.sum(px, axis=-1, keepdims=True)
        s2_ref[...] = scale * s2_ref[...] + jnp.sum(px * x_f32, axis=-1,
                                                    keepdims=True)
        m_ref[...] = m_new

    if not needs_mask:
        _update(e)                            # T tile-aligned: no masking at all
    else:
        @pl.when(t != last)
        def _():
            _update(e)                        # interior tiles: no mask work

        @pl.when(t == last)
        def _():
            valid = seq_len - last * TT       # static Python int
            col = lax.broadcasted_iota(jnp.int32, (1, TT), 1)
            _update(jnp.where(col < valid, e, _NEG_INF))

    @pl.when(t == last)
    def _():
        inv_l = 1.0 / l_ref[...]
        mean = s1_ref[...] * inv_l
        var = s2_ref[...] * inv_l - mean * mean
        std = jnp.sqrt(jnp.maximum(var, 1e-9))
        o_ref[0, 0:C, :] = mean.astype(o_ref.dtype)
        o_ref[0, C:2 * C, :] = std.astype(o_ref.dtype)


def attentive_stats_pool(x, w1, b1, w2, b2=None, *, block_t=None):
    """x: (B, C, T) (f32 or bf16). w1: (A, C, 1), b1: (A,), w2: (C, A, 1).
    b2 is accepted for API parity but is mathematically redundant (softmax over
    T is shift-invariant per channel) and is not used.
    Returns (B, 2*C) = concat([attentive mean, attentive std], axis=1)."""
    B, C, T = x.shape
    A = w1.shape[0]
    assert w1.shape == (A, C, 1) and b1.shape == (A,)
    assert w2.shape == (C, A, 1)
    del b2

    itemsize = jnp.dtype(x.dtype).itemsize

    # Lane-dense T tile, multiple of 128; default targets ~2 MiB of x per grid
    # step so the ~0.35 us per-step overhead is amortized.
    if block_t is None:
        block_t = max(128, min(2048, ((2 << 20) // max(C * itemsize, 1))
                               // 128 * 128))
    TT = min(pl.cdiv(block_t, 128) * 128, pl.cdiv(T, 128) * 128)
    T_pad = pl.cdiv(T, TT) * TT
    x_p = x if T_pad == T else jnp.pad(x, ((0, 0), (0, 0), (0, T_pad - T)))
    num_t = T_pad // TT

    # Matmul operands in x's dtype (bf16 fast path when x is bf16); bias in f32.
    w1m = w1[..., 0].astype(x.dtype)                  # (A, C)
    w2m = w2[..., 0].astype(x.dtype)                  # (C, A)
    b1m = b1.reshape(A, 1).astype(jnp.float32)

    # Explicit scoped-VMEM budget: double-buffered x tile + f32 temporaries.
    est = 2 * C * TT * itemsize + 6 * C * TT * 4 + 2 * A * TT * 4 \
        + 2 * A * C * itemsize + 8 * C * 4
    vmem_limit = int(max(32 << 20, est + (4 << 20)))

    out = pl.pallas_call(
        functools.partial(_asp_kernel, seq_len=T, num_t=num_t),
        out_shape=jax.ShapeDtypeStruct((B, 2 * C, 1), x.dtype),
        grid_spec=pltpu.PrefetchScalarGridSpec(
            num_scalar_prefetch=0,
            grid=(B, num_t),                          # reduction axis innermost
            in_specs=[
                pl.BlockSpec((1, C, TT), lambda b, t: (b, 0, t)),   # x tile
                pl.BlockSpec((A, C), lambda b, t: (0, 0)),          # w1 resident
                pl.BlockSpec((A, 1), lambda b, t: (0, 0)),          # b1 resident
                pl.BlockSpec((C, A), lambda b, t: (0, 0)),          # w2 resident
            ],
            out_specs=pl.BlockSpec((1, 2 * C, 1), lambda b, t: (b, 0, 0)),
            scratch_shapes=[pltpu.VMEM((C, 1), jnp.float32)] * 4,   # m, l, s1, s2
        ),
        compiler_params=pltpu.CompilerParams(
            dimension_semantics=("parallel", "arbitrary"),
            vmem_limit_bytes=vmem_limit),
    )(x_p, w1m, b1m, w2m)

    return out[..., 0]


def _ref_forward(x, w1, b1, w2, b2):
    """Pure-JAX reference matching the PyTorch forward (global_context_att=False).
    Keeps the b2 add so the kernel's bias-drop optimization is verified."""
    alpha = jnp.tanh(jnp.einsum('ac,bct->bat', w1[..., 0], x) + b1[None, :, None])
    alpha = jax.nn.softmax(
        jnp.einsum('ca,bat->bct', w2[..., 0], alpha) + b2[None, :, None], axis=2)
    mean = jnp.sum(alpha * x, axis=2)
    residuals = jnp.sum(alpha * x * x, axis=2) - mean * mean
    std = jnp.sqrt(jnp.maximum(residuals, 1e-9))
    return jnp.concatenate([mean, std], axis=1)


if __name__ == "__main__":
    key = jax.random.PRNGKey(0)
    B, C, A, T = 2, 64, 32, 200           # in_dim=64, attention_channels=32
    ks = jax.random.split(key, 5)
    x = jax.random.normal(ks[0], (B, C, T), jnp.float32)
    w1 = 0.3 * jax.random.normal(ks[1], (A, C, 1), jnp.float32)
    b1 = 0.1 * jax.random.normal(ks[2], (A,), jnp.float32)
    w2 = 0.3 * jax.random.normal(ks[3], (C, A, 1), jnp.float32)
    b2 = 0.1 * jax.random.normal(ks[4], (C,), jnp.float32)

    ref = _ref_forward(x, w1, b1, w2, b2)

    # 1) f32 path, block_t=128 -> T padded to 256, two T tiles: exercises the
    #    online-softmax carry and the last-tile-only mask.
    out_f32 = attentive_stats_pool(x, w1, b1, w2, b2, block_t=128)
    out_f32 = jax.block_until_ready(out_f32)
    assert out_f32.shape == (B, 2 * C), out_f32.shape
    err_f32 = float(jnp.max(jnp.abs(out_f32 - ref)))
    assert jnp.allclose(out_f32, ref, atol=1e-4, rtol=1e-4), err_f32

    # 2) bf16 fast path (bf16 x in HBM, bf16 MXU operands, f32 accumulation),
    #    default (large) block_t: single T tile with tail mask.
    out_bf16 = attentive_stats_pool(x.astype(jnp.bfloat16), w1, b1, w2, b2)
    out_bf16 = jax.block_until_ready(out_bf16).astype(jnp.float32)
    assert out_bf16.shape == (B, 2 * C), out_bf16.shape
    err_bf16 = float(jnp.max(jnp.abs(out_bf16 - ref)))
    assert jnp.allclose(out_bf16, ref, atol=6e-2, rtol=6e-2), err_bf16

    print("KERNEL_OK")
</pallas_src>

<mosaic_0001>
module attributes {stable_mosaic.version = 11 : i64} {
  func.func @_asp_kernel(%arg0: i32, %arg1: i32, %arg2: memref<1x64x128xf32, #tpu.memory_space<vmem>>, %arg3: memref<32x64xf32, #tpu.memory_space<vmem>>, %arg4: memref<32x1xf32, #tpu.memory_space<vmem>>, %arg5: memref<64x32xf32, #tpu.memory_space<vmem>>, %arg6: memref<1x128x1xf32, #tpu.memory_space<vmem>>, %arg7: memref<64x1xf32, #tpu.memory_space<vmem>>, %arg8: memref<64x1xf32, #tpu.memory_space<vmem>>, %arg9: memref<64x1xf32, #tpu.memory_space<vmem>>, %arg10: memref<64x1xf32, #tpu.memory_space<vmem>>) attributes {dimension_semantics = [#tpu.dimension_semantics<parallel>, #tpu.dimension_semantics<arbitrary>], iteration_bounds = array<i64: 2, 2>, scalar_prefetch = 0 : i64, scratch_operands = 4 : i64, tpu.core_type = #tpu.core_type<tc>, window_params = [{transform_indices = @transform_0, window_bounds = array<i64: 1, 64, 128>}, {pipeline_mode = #tpu.pipeline_mode<synchronous>, transform_indices = @transform_1, window_bounds = array<i64: 32, 64>}, {pipeline_mode = #tpu.pipeline_mode<synchronous>, transform_indices = @transform_2, window_bounds = array<i64: 32, 1>}, {pipeline_mode = #tpu.pipeline_mode<synchronous>, transform_indices = @transform_3, window_bounds = array<i64: 64, 32>}, {transform_indices = @transform_4, window_bounds = array<i64: 1, 128, 1>}]} {
    %c0_i32 = arith.constant 0 : i32
    %0 = arith.cmpi eq, %arg1, %c0_i32 : i32
    %1 = arith.extui %0 : i1 to i32
    %c0_i32_0 = arith.constant 0 : i32
    %2 = arith.cmpi ne, %1, %c0_i32_0 : i32
    scf.if %2 {
      %cst_15 = arith.constant -1.000000e+30 : f32
      %22 = vector.broadcast %cst_15 : f32 to vector<64x1xf32>
      %c0_16 = arith.constant 0 : index
      %c0_17 = arith.constant 0 : index
      %23 = vector.load %arg7[%c0_16, %c0_17] : memref<64x1xf32, #tpu.memory_space<vmem>>, vector<64x1xf32>
      tpu.vector_store %arg7[%c0_16, %c0_17], %22 {strides = array<i32>} : memref<64x1xf32, #tpu.memory_space<vmem>>, vector<64x1xf32>,
      %cst_18 = arith.constant 0.000000e+00 : f32
      %24 = vector.broadcast %cst_18 : f32 to vector<64x1xf32>
      %c0_19 = arith.constant 0 : index
      %c0_20 = arith.constant 0 : index
      %25 = vector.load %arg8[%c0_19, %c0_20] : memref<64x1xf32, #tpu.memory_space<vmem>>, vector<64x1xf32>
      tpu.vector_store %arg8[%c0_19, %c0_20], %24 {strides = array<i32>} : memref<64x1xf32, #tpu.memory_space<vmem>>, vector<64x1xf32>,
      %cst_21 = arith.constant 0.000000e+00 : f32
      %26 = vector.broadcast %cst_21 : f32 to vector<64x1xf32>
      %c0_22 = arith.constant 0 : index
      %c0_23 = arith.constant 0 : index
      %27 = vector.load %arg9[%c0_22, %c0_23] : memref<64x1xf32, #tpu.memory_space<vmem>>, vector<64x1xf32>
      tpu.vector_store %arg9[%c0_22, %c0_23], %26 {strides = array<i32>} : memref<64x1xf32, #tpu.memory_space<vmem>>, vector<64x1xf32>,
      %cst_24 = arith.constant 0.000000e+00 : f32
      %28 = vector.broadcast %cst_24 : f32 to vector<64x1xf32>
      %c0_25 = arith.constant 0 : index
      %c0_26 = arith.constant 0 : index
      %29 = vector.load %arg10[%c0_25, %c0_26] : memref<64x1xf32, #tpu.memory_space<vmem>>, vector<64x1xf32>
      tpu.vector_store %arg10[%c0_25, %c0_26], %28 {strides = array<i32>} : memref<64x1xf32, #tpu.memory_space<vmem>>, vector<64x1xf32>,
    } else {
    }
    %c0 = arith.constant 0 : index
    %c0_1 = arith.constant 0 : index
    %c0_2 = arith.constant 0 : index
    %3 = vector.load %arg2[%c0, %c0_1, %c0_2] : memref<1x64x128xf32, #tpu.memory_space<vmem>>, vector<1x64x128xf32>
    %4 = vector.shape_cast %3 : vector<1x64x128xf32> to vector<64x128xf32>
    %c0_3 = arith.constant 0 : index
    %c0_4 = arith.constant 0 : index
    %5 = vector.load %arg3[%c0_3, %c0_4] : memref<32x64xf32, #tpu.memory_space<vmem>>, vector<32x64xf32>
    %cst = arith.constant dense<0.000000e+00> : vector<32x128xf32>
    %6 = tpu.matmul %5, %4, %cst {dimension_numbers = #tpu.dot_dimension_numbers<[1], [0], [0], [1], [0, 0, 1, 1], [], []>} : vector<32x64xf32>, vector<64x128xf32>, vector<32x128xf32> -> vector<32x128xf32>
    %c0_5 = arith.constant 0 : index
    %c0_6 = arith.constant 0 : index
    %7 = vector.load %arg4[%c0_5, %c0_6] : memref<32x1xf32, #tpu.memory_space<vmem>>, vector<32x1xf32>
    %8 = vector.broadcast %7 : vector<32x1xf32> to vector<32x128xf32>
    %9 = arith.addf %6, %8 : vector<32x128xf32>
    %10 = math.tanh %9 : vector<32x128xf32>
    %c0_7 = arith.constant 0 : index
    %c0_8 = arith.constant 0 : index
    %11 = vector.load %arg5[%c0_7, %c0_8] : memref<64x32xf32, #tpu.memory_space<vmem>>, vector<64x32xf32>
    %cst_9 = arith.constant dense<0.000000e+00> : vector<64x128xf32>
    %12 = tpu.matmul %11, %10, %cst_9 {dimension_numbers = #tpu.dot_dimension_numbers<[1], [0], [0], [1], [0, 0, 1, 1], [], []>} : vector<64x32xf32>, vector<32x128xf32>, vector<64x128xf32> -> vector<64x128xf32>
    %c1_i32 = arith.constant 1 : i32
    %13 = arith.cmpi ne, %arg1, %c1_i32 : i32
    %14 = arith.extui %13 : i1 to i32
    %c0_i32_10 = arith.constant 0 : i32
    %15 = arith.cmpi ne, %14, %c0_i32_10 : i32
    scf.if %15 {
      %c0_15 = arith.constant 0 : index
      %c0_16 = arith.constant 0 : index
      %22 = vector.load %arg7[%c0_15, %c0_16] : memref<64x1xf32, #tpu.memory_space<vmem>>, vector<64x1xf32>
      %cst_17 = arith.constant dense<0xFF800000> : vector<64xf32>
      %23 = vector.multi_reduction <maximumf>, %12, %cst_17 [1] : vector<64x128xf32> to vector<64xf32>
      %24 = vector.shape_cast %23 : vector<64xf32> to vector<64x1xf32>
      %25 = arith.maximumf %22, %24 : vector<64x1xf32>
      %26 = arith.subf %22, %25 : vector<64x1xf32>
      %27 = math.exp %26 : vector<64x1xf32>
      %28 = vector.broadcast %25 : vector<64x1xf32> to vector<64x128xf32>
      %29 = arith.subf %12, %28 : vector<64x128xf32>
      %30 = math.exp %29 : vector<64x128xf32>
      %31 = arith.mulf %30, %4 : vector<64x128xf32>
      %c0_18 = arith.constant 0 : index
      %c0_19 = arith.constant 0 : index
      %32 = vector.load %arg8[%c0_18, %c0_19] : memref<64x1xf32, #tpu.memory_space<vmem>>, vector<64x1xf32>
      %33 = arith.mulf %27, %32 : vector<64x1xf32>
      %cst_20 = arith.constant dense<0.000000e+00> : vector<64xf32>
      %34 = vector.multi_reduction <add>, %30, %cst_20 [1] : vector<64x128xf32> to vector<64xf32>
      %35 = vector.shape_cast %34 : vector<64xf32> to vector<64x1xf32>
      %36 = arith.addf %33, %35 : vector<64x1xf32>
      %c0_21 = arith.constant 0 : index
      %c0_22 = arith.constant 0 : index
      %37 = vector.load %arg8[%c0_21, %c0_22] : memref<64x1xf32, #tpu.memory_space<vmem>>, vector<64x1xf32>
      tpu.vector_store %arg8[%c0_21, %c0_22], %36 {strides = array<i32>} : memref<64x1xf32, #tpu.memory_space<vmem>>, vector<64x1xf32>,
      %c0_23 = arith.constant 0 : index
      %c0_24 = arith.constant 0 : index
      %38 = vector.load %arg9[%c0_23, %c0_24] : memref<64x1xf32, #tpu.memory_space<vmem>>, vector<64x1xf32>
      %39 = arith.mulf %27, %38 : vector<64x1xf32>
      %cst_25 = arith.constant dense<0.000000e+00> : vector<64xf32>
      %40 = vector.multi_reduction <add>, %31, %cst_25 [1] : vector<64x128xf32> to vector<64xf32>
      %41 = vector.shape_cast %40 : vector<64xf32> to vector<64x1xf32>
      %42 = arith.addf %39, %41 : vector<64x1xf32>
      %c0_26 = arith.constant 0 : index
      %c0_27 = arith.constant 0 : index
      %43 = vector.load %arg9[%c0_26, %c0_27] : memref<64x1xf32, #tpu.memory_space<vmem>>, vector<64x1xf32>
      tpu.vector_store %arg9[%c0_26, %c0_27], %42 {strides = array<i32>} : memref<64x1xf32, #tpu.memory_space<vmem>>, vector<64x1xf32>,
      %c0_28 = arith.constant 0 : index
      %c0_29 = arith.constant 0 : index
      %44 = vector.load %arg10[%c0_28, %c0_29] : memref<64x1xf32, #tpu.memory_space<vmem>>, vector<64x1xf32>
      %45 = arith.mulf %27, %44 : vector<64x1xf32>
      %46 = arith.mulf %31, %4 : vector<64x128xf32>
      %cst_30 = arith.constant dense<0.000000e+00> : vector<64xf32>
      %47 = vector.multi_reduction <add>, %46, %cst_30 [1] : vector<64x128xf32> to vector<64xf32>
      %48 = vector.shape_cast %47 : vector<64xf32> to vector<64x1xf32>
      %49 = arith.addf %45, %48 : vector<64x1xf32>
      %c0_31 = arith.constant 0 : index
      %c0_32 = arith.constant 0 : index
      %50 = vector.load %arg10[%c0_31, %c0_32] : memref<64x1xf32, #tpu.memory_space<vmem>>, vector<64x1xf32>
      tpu.vector_store %arg10[%c0_31, %c0_32], %49 {strides = array<i32>} : memref<64x1xf32, #tpu.memory_space<vmem>>, vector<64x1xf32>,
      %c0_33 = arith.constant 0 : index
      %c0_34 = arith.constant 0 : index
      %51 = vector.load %arg7[%c0_33, %c0_34] : memref<64x1xf32, #tpu.memory_space<vmem>>, vector<64x1xf32>
      tpu.vector_store %arg7[%c0_33, %c0_34], %25 {strides = array<i32>} : memref<64x1xf32, #tpu.memory_space<vmem>>, vector<64x1xf32>,
    } else {
    }
    %c1_i32_11 = arith.constant 1 : i32
    %16 = arith.cmpi eq, %arg1, %c1_i32_11 : i32
    %17 = arith.extui %16 : i1 to i32
    %c0_i32_12 = arith.constant 0 : i32
    %18 = arith.cmpi ne, %17, %c0_i32_12 : i32
    scf.if %18 {
      %22 = tpu.iota {dimensions = array<i32: 1>} : vector<1x128xi32>
      %c72_i32 = arith.constant 72 : i32
      %23 = vector.broadcast %c72_i32 : i32 to vector<1x128xi32>
      %24 = arith.cmpi slt, %22, %23 : vector<1x128xi32>
      %cst_15 = arith.constant -1.000000e+30 : f32
      %25 = vector.shape_cast %24 : vector<1x128xi1> to vector<1x128xi1>
      %26 = vector.broadcast %25 : vector<1x128xi1> to vector<64x128xi1>
      %27 = vector.broadcast %cst_15 : f32 to vector<64x128xf32>
      %28 = arith.select %26, %12, %27 : vector<64x128xi1>, vector<64x128xf32>
      %c0_16 = arith.constant 0 : index
      %c0_17 = arith.constant 0 : index
      %29 = vector.load %arg7[%c0_16, %c0_17] : memref<64x1xf32, #tpu.memory_space<vmem>>, vector<64x1xf32>
      %cst_18 = arith.constant dense<0xFF800000> : vector<64xf32>
      %30 = vector.multi_reduction <maximumf>, %28, %cst_18 [1] : vector<64x128xf32> to vector<64xf32>
      %31 = vector.shape_cast %30 : vector<64xf32> to vector<64x1xf32>
      %32 = arith.maximumf %29, %31 : vector<64x1xf32>
      %33 = arith.subf %29, %32 : vector<64x1xf32>
      %34 = math.exp %33 : vector<64x1xf32>
      %35 = vector.broadcast %32 : vector<64x1xf32> to vector<64x128xf32>
      %36 = arith.subf %28, %35 : vector<64x128xf32>
      %37 = math.exp %36 : vector<64x128xf32>
      %38 = arith.mulf %37, %4 : vector<64x128xf32>
      %c0_19 = arith.constant 0 : index
      %c0_20 = arith.constant 0 : index
      %39 = vector.load %arg8[%c0_19, %c0_20] : memref<64x1xf32, #tpu.memory_space<vmem>>, vector<64x1xf32>
      %40 = arith.mulf %34, %39 : vector<64x1xf32>
      %cst_21 = arith.constant dense<0.000000e+00> : vector<64xf32>
      %41 = vector.multi_reduction <add>, %37, %cst_21 [1] : vector<64x128xf32> to vector<64xf32>
      %42 = vector.shape_cast %41 : vector<64xf32> to vector<64x1xf32>
      %43 = arith.addf %40, %42 : vector<64x1xf32>
      %c0_22 = arith.constant 0 : index
      %c0_23 = arith.constant 0 : index
      %44 = vector.load %arg8[%c0_22, %c0_23] : memref<64x1xf32, #tpu.memory_space<vmem>>, vector<64x1xf32>
      tpu.vector_store %arg8[%c0_22, %c0_23], %43 {strides = array<i32>} : memref<64x1xf32, #tpu.memory_space<vmem>>, vector<64x1xf32>,
      %c0_24 = arith.constant 0 : index
      %c0_25 = arith.constant 0 : index
      %45 = vector.load %arg9[%c0_24, %c0_25] : memref<64x1xf32, #tpu.memory_space<vmem>>, vector<64x1xf32>
      %46 = arith.mulf %34, %45 : vector<64x1xf32>
      %cst_26 = arith.constant dense<0.000000e+00> : vector<64xf32>
      %47 = vector.multi_reduction <add>, %38, %cst_26 [1] : vector<64x128xf32> to vector<64xf32>
      %48 = vector.shape_cast %47 : vector<64xf32> to vector<64x1xf32>
      %49 = arith.addf %46, %48 : vector<64x1xf32>
      %c0_27 = arith.constant 0 : index
      %c0_28 = arith.constant 0 : index
      %50 = vector.load %arg9[%c0_27, %c0_28] : memref<64x1xf32, #tpu.memory_space<vmem>>, vector<64x1xf32>
      tpu.vector_store %arg9[%c0_27, %c0_28], %49 {strides = array<i32>} : memref<64x1xf32, #tpu.memory_space<vmem>>, vector<64x1xf32>,
      %c0_29 = arith.constant 0 : index
      %c0_30 = arith.constant 0 : index
      %51 = vector.load %arg10[%c0_29, %c0_30] : memref<64x1xf32, #tpu.memory_space<vmem>>, vector<64x1xf32>
      %52 = arith.mulf %34, %51 : vector<64x1xf32>
      %53 = arith.mulf %38, %4 : vector<64x128xf32>
      %cst_31 = arith.constant dense<0.000000e+00> : vector<64xf32>
      %54 = vector.multi_reduction <add>, %53, %cst_31 [1] : vector<64x128xf32> to vector<64xf32>
      %55 = vector.shape_cast %54 : vector<64xf32> to vector<64x1xf32>
      %56 = arith.addf %52, %55 : vector<64x1xf32>
      %c0_32 = arith.constant 0 : index
      %c0_33 = arith.constant 0 : index
      %57 = vector.load %arg10[%c0_32, %c0_33] : memref<64x1xf32, #tpu.memory_space<vmem>>, vector<64x1xf32>
      tpu.vector_store %arg10[%c0_32, %c0_33], %56 {strides = array<i32>} : memref<64x1xf32, #tpu.memory_space<vmem>>, vector<64x1xf32>,
      %c0_34 = arith.constant 0 : index
      %c0_35 = arith.constant 0 : index
      %58 = vector.load %arg7[%c0_34, %c0_35] : memref<64x1xf32, #tpu.memory_space<vmem>>, vector<64x1xf32>
      tpu.vector_store %arg7[%c0_34, %c0_35], %32 {strides = array<i32>} : memref<64x1xf32, #tpu.memory_space<vmem>>, vector<64x1xf32>,
    } else {
    }
    %c1_i32_13 = arith.constant 1 : i32
    %19 = arith.cmpi eq, %arg1, %c1_i32_13 : i32
    %20 = arith.extui %19 : i1 to i32
    %c0_i32_14 = arith.constant 0 : i32
    %21 = arith.cmpi ne, %20, %c0_i32_14 : i32
    scf.if %21 {
      %c0_15 = arith.constant 0 : index
      %c0_16 = arith.constant 0 : index
      %22 = vector.load %arg8[%c0_15, %c0_16] : memref<64x1xf32, #tpu.memory_space<vmem>>, vector<64x1xf32>
      %cst_17 = arith.constant 1.000000e+00 : f32
      %23 = vector.broadcast %cst_17 : f32 to vector<64x1xf32>
      %24 = arith.divf %23, %22 : vector<64x1xf32>
      %c0_18 = arith.constant 0 : index
      %c0_19 = arith.constant 0 : index
      %25 = vector.load %arg9[%c0_18, %c0_19] : memref<64x1xf32, #tpu.memory_space<vmem>>, vector<64x1xf32>
      %26 = arith.mulf %25, %24 : vector<64x1xf32>
      %c0_20 = arith.constant 0 : index
      %c0_21 = arith.constant 0 : index
      %27 = vector.load %arg10[%c0_20, %c0_21] : memref<64x1xf32, #tpu.memory_space<vmem>>, vector<64x1xf32>
      %28 = arith.mulf %27, %24 : vector<64x1xf32>
      %29 = arith.mulf %26, %26 : vector<64x1xf32>
      %30 = arith.subf %28, %29 : vector<64x1xf32>
      %cst_22 = arith.constant 9.99999971E-10 : f32
      %31 = vector.broadcast %cst_22 : f32 to vector<64x1xf32>
      %32 = arith.maximumf %30, %31 : vector<64x1xf32>
      %33 = math.sqrt %32 : vector<64x1xf32>
      %c0_23 = arith.constant 0 : index
      %c0_24 = arith.constant 0 : index
      %c0_25 = arith.constant 0 : index
      %34 = vector.load %arg6[%c0_23, %c0_24, %c0_25] : memref<1x128x1xf32, #tpu.memory_space<vmem>>, vector<1x64x1xf32>
      %35 = vector.shape_cast %34 : vector<1x64x1xf32> to vector<64x1xf32>
      %36 = vector.shape_cast %26 : vector<64x1xf32> to vector<1x64x1xf32>
      tpu.vector_store %arg6[%c0_23, %c0_24, %c0_25], %36 {strides = array<i32>} : memref<1x128x1xf32, #tpu.memory_space<vmem>>, vector<1x64x1xf32>,
      %c0_26 = arith.constant 0 : index
      %c64 = arith.constant 64 : index
      %c0_27 = arith.constant 0 : index
      %37 = vector.load %arg6[%c0_26, %c64, %c0_27] : memref<1x128x1xf32, #tpu.memory_space<vmem>>, vector<1x64x1xf32>
      %38 = vector.shape_cast %37 : vector<1x64x1xf32> to vector<64x1xf32>
      %39 = vector.shape_cast %33 : vector<64x1xf32> to vector<1x64x1xf32>
      tpu.vector_store %arg6[%c0_26, %c64, %c0_27], %39 {strides = array<i32>} : memref<1x128x1xf32, #tpu.memory_space<vmem>>, vector<1x64x1xf32>,
    } else {
    }
    return
  }
  func.func @transform_0(%arg0: i32, %arg1: i32) -> (i32, i32, i32) {
    %c0_i32 = arith.constant 0 : i32
    %c0_i32_0 = arith.constant 0 : i32
    return %arg0, %c0_i32, %arg1 : i32, i32, i32
  }
  func.func @transform_1(%arg0: i32, %arg1: i32) -> (i32, i32) {
    %c0_i32 = arith.constant 0 : i32
    %c0_i32_0 = arith.constant 0 : i32
    %c0_i32_1 = arith.constant 0 : i32
    return %c0_i32, %c0_i32_0 : i32, i32
  }
  func.func @transform_2(%arg0: i32, %arg1: i32) -> (i32, i32) {
    %c0_i32 = arith.constant 0 : i32
    %c0_i32_0 = arith.constant 0 : i32
    %c0_i32_1 = arith.constant 0 : i32
    return %c0_i32, %c0_i32_0 : i32, i32
  }
  func.func @transform_3(%arg0: i32, %arg1: i32) -> (i32, i32) {
    %c0_i32 = arith.constant 0 : i32
    %c0_i32_0 = arith.constant 0 : i32
    %c0_i32_1 = arith.constant 0 : i32
    return %c0_i32, %c0_i32_0 : i32, i32
  }
  func.func @transform_4(%arg0: i32, %arg1: i32) -> (i32, i32, i32) {
    %c0_i32 = arith.constant 0 : i32
    %c0_i32_0 = arith.constant 0 : i32
    %c0_i32_1 = arith.constant 0 : i32
    return %arg0, %c0_i32, %c0_i32_0 : i32, i32, i32
  }
}

</mosaic_0001>

<llo_original>
// kernel: tpu_custom_call.1
$region0: #{tpu_custom_call.1}
  #allocation0 [shape = 'u32[]', space=smem, size = 0x4, offset = 0x4, fixed_abs, tag = 'smem constant byte address 0x4 - core index']
  #allocation1 [shape = 'u32[72,128]{1,0:T(1,128)}', space=vmem, size = 0x9000, scoped, tag = 'internal scratch']
  #allocation2 [shape = 'f32[64,1]{1,0:T(8,128)}', space=vmem, size = 0x8000, scoped, tag = 'scratch operand']
  #allocation3 [shape = 'f32[64,1]{1,0:T(8,128)}', space=vmem, size = 0x8000, scoped, tag = 'scratch operand']
  #allocation4 [shape = 'f32[64,1]{1,0:T(8,128)}', space=vmem, size = 0x8000, scoped, tag = 'scratch operand']
  #allocation5 [shape = 'f32[64,1]{1,0:T(8,128)}', space=vmem, size = 0x8000, scoped, tag = 'scratch operand']
  %s0 = inlined_call_operand.hbm [shape: f32[2,64,256], index: 0, kind: input, shape index: {}]
  %s1 = inlined_call_operand.vmem [shape: f32[32,64], index: 1, kind: input, shape index: {}]
  %s2 = inlined_call_operand.vmem [shape: f32[32,1], index: 2, kind: input, shape index: {}]
  %s3 = inlined_call_operand.vmem [shape: f32[64,32], index: 3, kind: input, shape index: {}]
  %s4 = inlined_call_operand.vmem [shape: f32[2,128,1], index: 4, kind: output, shape index: {}]
  %s5 = sld [smem:[#allocation0]]
  $region65: #{tpu_custom_call.1} parent=0
    _
  %s7 = ssub.s32 1, %s5
  %s8 = scalar_select 0, %s7, %s5
  $region1: #{tpu_custom_call.1} parent=0
    #allocation6 [shape = 'u8[65536]{0}', space=vmem, size = 0x10000, scoped, tag = 'input window, operand 0']
    #allocation7 [shape = 's32[2]{0}', space=sflag, size = 0x8, scoped, tag = 'scoped memory for tpu_custom_call.1']
    %9 = vsyncpa [#allocation7], 0
    %s10 = scalar_lea.sflag [#allocation7], 1
    %11 = vsyncpa %s10, 0
    loop: start=0, step=1, limit=6
    $region2: #{tpu_custom_call.1} parent=1 // loop_pre_header
      _
    $region3: #{tpu_custom_call.1} parent=1 // loop_header
      %s13 = sphi 0, %s17
      %p14 = scmp.ge.s32.totalorder %s13, 6
      %s20 = sphi 0, %s32
      %s21 = sphi 0, %s28
      %s22 = sphi 0, %s20
      %s23 = sphi 0, %s21
      %s24 = sphi 0, %s22
      %s25 = sphi 0, %s23
      %s37 = sphi 0, %s39
      %s40 = sphi 0, %s37
      %s41 = sphi 0, %s40
      %s57 = sphi 0, %s41
      %s61 = sphi 0, %s61
      %s63 = sphi 0, %s61
      %s64 = sphi 0, %s63
      %s78 = sphi 0, %s64
      %s82 = sphi 0, %s82
      %s84 = sphi 0, %s82
      %s85 = sphi 0, %s84
      %s99 = sphi 0, %s85
      %s103 = sphi 0, %s103
      %s105 = sphi 0, %s103
      %s106 = sphi 0, %s105
      %s120 = sphi 0, %s106
      %s126 = sphi 0, %s128
      %s129 = sphi 0, %s126
      %s130 = sphi 0, %s129
      %s146 = sphi 0, %s130
    $region4: #{tpu_custom_call.1} parent=1 // loop_header_branch
      %16 = sbr.rel (%p14) target = $region8
    $region5: #{tpu_custom_call.1} parent=1 // loop_body
      %s18 = ssub.s32 %s13, 1
      %s19 = ssub.s32 %s13, 2
      %s26 = sadd.s32 1, %s21
      %p27 = scmp.ge.s32.totalorder %s26, 2
      %s28 = scalar_select %p27, 0, %s26
      %s29 = sadd.s32 1, %s20
      %s30 = scalar_select %p27, %s29, %s20
      %p31 = scmp.ge.s32.totalorder %s30, 2
      %s32 = scalar_select %p31, 0, %s30
      %s33 = ssub.s32 %s20, %s32
      %s34 = ssub.s32 %s21, %s28
      %s35 = sor.u32 %s33, %s34
      %p36 = scmp.eq.s32.totalorder %s35, 0
      %s38 = sadd.s32 %s37, 1
      %s39 = scalar_select %p36, %s37, %s38
      %p42 = pneg %p36
      %p43 = scmp.eq.s32.totalorder %s13, 3
      %p44 = por %p42, %p43
      %p45 = scmp.ne.s32.totalorder %s37, %s40
      %p46 = scmp.eq.s32.totalorder %s13, 0
      %p47 = por %p45, %p46
      %p48 = scmp.ne.s32.totalorder %s37, %s40
      %p49 = scmp.eq.s32.totalorder %s18, 3
      %p50 = por %p48, %p49
      %p51 = scmp.ne.s32.totalorder %s40, %s41
      %p52 = scmp.eq.s32.totalorder %s18, 0
      %p53 = por %p51, %p52
      %p54 = scmp.ne.s32.totalorder %s40, %s41
      %p55 = scmp.eq.s32.totalorder %s19, 3
      %p56 = por %p54, %p55
      %p58 = scmp.ne.s32.totalorder %s41, %s57
      %p59 = scmp.eq.s32.totalorder %s19, 0
      %p60 = por %p58, %p59
      %s62 = sadd.s32 %s61, 1
      %p65 = scmp.eq.s32.totalorder %s13, 3
      %p66 = scmp.ne.s32.totalorder %s61, %s63
      %p67 = scmp.eq.s32.totalorder %s13, 0
      %p68 = por %p66, %p67
      %p69 = scmp.ne.s32.totalorder %s61, %s63
      %p70 = scmp.eq.s32.totalorder %s18, 3
      %p71 = por %p69, %p70
      %p72 = scmp.ne.s32.totalorder %s63, %s64
      %p73 = scmp.eq.s32.totalorder %s18, 0
      %p74 = por %p72, %p73
      %p75 = scmp.ne.s32.totalorder %s63, %s64
      %p76 = scmp.eq.s32.totalorder %s19, 3
      %p77 = por %p75, %p76
      %p79 = scmp.ne.s32.totalorder %s64, %s78
      %p80 = scmp.eq.s32.totalorder %s19, 0
      %p81 = por %p79, %p80
      %s83 = sadd.s32 %s82, 1
      %p86 = scmp.eq.s32.totalorder %s13, 3
      %p87 = scmp.ne.s32.totalorder %s82, %s84
      %p88 = scmp.eq.s32.totalorder %s13, 0
      %p89 = por %p87, %p88
      %p90 = scmp.ne.s32.totalorder %s82, %s84
      %p91 = scmp.eq.s32.totalorder %s18, 3
      %p92 = por %p90, %p91
      %p93 = scmp.ne.s32.totalorder %s84, %s85
      %p94 = scmp.eq.s32.totalorder %s18, 0
      %p95 = por %p93, %p94
      %p96 = scmp.ne.s32.totalorder %s84, %s85
      %p97 = scmp.eq.s32.totalorder %s19, 3
      %p98 = por %p96, %p97
      %p100 = scmp.ne.s32.totalorder %s85, %s99
      %p101 = scmp.eq.s32.totalorder %s19, 0
      %p102 = por %p100, %p101
      %s104 = sadd.s32 %s103, 1
      %p107 = scmp.eq.s32.totalorder %s13, 3
      %p108 = scmp.ne.s32.totalorder %s103, %s105
      %p109 = scmp.eq.s32.totalorder %s13, 0
      %p110 = por %p108, %p109
      %p111 = scmp.ne.s32.totalorder %s103, %s105
      %p112 = scmp.eq.s32.totalorder %s18, 3
      %p113 = por %p111, %p112
      %p114 = scmp.ne.s32.totalorder %s105, %s106
      %p115 = scmp.eq.s32.totalorder %s18, 0
      %p116 = por %p114, %p115
      %p117 = scmp.ne.s32.totalorder %s105, %s106
      %p118 = scmp.eq.s32.totalorder %s19, 3
      %p119 = por %p117, %p118
      %p121 = scmp.ne.s32.totalorder %s106, %s120
      %p122 = scmp.eq.s32.totalorder %s19, 0
      %p123 = por %p121, %p122
      %s124 = ssub.s32 %s20, %s32
      %p125 = scmp.eq.s32.totalorder %s124, 0
      %s127 = sadd.s32 %s126, 1
      %s128 = scalar_select %p125, %s126, %s127
      %p131 = pneg %p125
      %p132 = scmp.eq.s32.totalorder %s13, 3
      %p133 = por %p131, %p132
      %p134 = scmp.ne.s32.totalorder %s126, %s129
      %p135 = scmp.eq.s32.totalorder %s13, 0
      %p136 = por %p134, %p135
      %p137 = scmp.ne.s32.totalorder %s126, %s129
      %p138 = scmp.eq.s32.totalorder %s18, 3
      %p139 = por %p137, %p138
      %p140 = scmp.ne.s32.totalorder %s129, %s130
      %p141 = scmp.eq.s32.totalorder %s18, 0
      %p142 = por %p140, %p141
      %p143 = scmp.ne.s32.totalorder %s129, %s130
      %p144 = scmp.eq.s32.totalorder %s19, 3
      %p145 = por %p143, %p144
      %p147 = scmp.ne.s32.totalorder %s130, %s146
      %p148 = scmp.eq.s32.totalorder %s19, 0
      %p149 = por %p147, %p148
      %p150 = scmp.le.s32.totalorder 1, %s13
      %p151 = scmp.lt.s32.totalorder %s13, 5
      %p152 = pnand %p150, %p151
      %p153 = pneg %p152
      // Predicated region
      $region9: #{tpu_custom_call.1} parent=5 // pred_check
        _
      $region10: #{tpu_custom_call.1} parent=5 // pred_check_branch
        %155 = sbr.rel (%p152) target = $region12
      $region11: #{tpu_custom_call.1} parent=5 // pred_region
        %s156 = ssub.s32 %s13, 1
        // Predicated region
        $region13: #{tpu_custom_call.1} parent=11 // pred_check
          %p157 = pneg %p74
        $region14: #{tpu_custom_call.1} parent=11 // pred_check_branch
          %159 = sbr.rel (%p157) target = $region16
        $region15: #{tpu_custom_call.1} parent=11 // pred_region
          _
        $region16: #{tpu_custom_call.1} parent=11 // pred_fallthru
          _
        // Predicated region
        $region17: #{tpu_custom_call.1} parent=11 // pred_check
          %p160 = pneg %p95
        $region18: #{tpu_custom_call.1} parent=11 // pred_check_branch
          %162 = sbr.rel (%p160) target = $region20
        $region19: #{tpu_custom_call.1} parent=11 // pred_region
          _
        $region20: #{tpu_custom_call.1} parent=11 // pred_fallthru
          _
        // Predicated region
        $region21: #{tpu_custom_call.1} parent=11 // pred_check
          %p163 = pneg %p116
        $region22: #{tpu_custom_call.1} parent=11 // pred_check_branch
          %165 = sbr.rel (%p163) target = $region24
        $region23: #{tpu_custom_call.1} parent=11 // pred_region
          _
        $region24: #{tpu_custom_call.1} parent=11 // pred_fallthru
          _
      $region12: #{tpu_custom_call.1} parent=5 // pred_fallthru
        _
      %p166 = scmp.lt.s32.totalorder %s13, 4
      // Predicated region
      $region25: #{tpu_custom_call.1} parent=5 // pred_check
        %p167 = pneg %p166
      $region26: #{tpu_custom_call.1} parent=5 // pred_check_branch
        %169 = sbr.rel (%p167) target = $region28
      $region27: #{tpu_custom_call.1} parent=5 // pred_region
        // Predicated region
        $region29: #{tpu_custom_call.1} parent=27 // pred_check
          %p170 = pneg %p47
        $region30: #{tpu_custom_call.1} parent=27 // pred_check_branch
          %172 = sbr.rel (%p170) target = $region32
        $region31: #{tpu_custom_call.1} parent=27 // pred_region
          %s173 = sand.u32 %s37, 1
          %s174 = scalar_lea.sflag [#allocation7], %s173
          %s175 = sand.u32 %s37, 1
          %s176 = smul.addr %s175, 64
          %s177 = scalar_lea.vmem [#allocation6], %s176
          %179 = vsyncadd %s174, 0
          %s180 = smul.addr %s20, 16
          %s181 = sadd.s32 %s21, %s180
          %s182 = smul.addr %s181, 8
          %s183 = scalar_lea.hbm %s0, %s182
          %s184 = sshll.u32 %s183, 4
          %s185 = int_to_ptr.hbm [resolvable:$true] %s184
          %s186 = sshll.u32 %s177, 4
          %s187 = int_to_ptr.vmem [resolvable:$true] %s186
          %192 = dma.hbm_to_vmem [thread:$0]  %s185, 1024, %s187, %s174, 256, 128, 8
        $region32: #{tpu_custom_call.1} parent=27 // pred_fallthru
          _
      $region28: #{tpu_custom_call.1} parent=5 // pred_fallthru
        _
      %p193 = scmp.le.s32.totalorder 1, %s13
      %p194 = scmp.lt.s32.totalorder %s13, 5
      %p195 = pnand %p193, %p194
      %p196 = pneg %p195
      // Predicated region
      $region33: #{tpu_custom_call.1} parent=5 // pred_check
        _
      $region34: #{tpu_custom_call.1} parent=5 // pred_check_branch
        %198 = sbr.rel (%p195) target = $region36
      $region35: #{tpu_custom_call.1} parent=5 // pred_region
        %s199 = ssub.s32 %s13, 1
        %s200 = sand.u32 %s40, 1
        %s201 = scalar_lea.sflag [#allocation7], %s200
        %s202 = sand.u32 %s40, 1
        %s203 = smul.addr %s202, 64
        %s204 = scalar_lea.vmem [#allocation6], %s203
        // Predicated region
        $region37: #{tpu_custom_call.1} parent=35 // pred_check
          %p205 = pneg %p53
        $region38: #{tpu_custom_call.1} parent=35 // pred_check_branch
          %207 = sbr.rel (%p205) target = $region40
        $region39: #{tpu_custom_call.1} parent=35 // pred_region
          %209 = dma.done %s201, 1024
        $region40: #{tpu_custom_call.1} parent=35 // pred_fallthru
          _
        %s210 = sand.u32 %s40, 1
        %s211 = scalar_lea.sflag [#allocation7], %s210
        %s212 = sand.u32 %s40, 1
        %s213 = smul.addr %s212, 64
        %s214 = scalar_lea.vmem [#allocation6], %s213
        %p215 = pneg %p53
        %p216 = pneg %p50
        %p217 = pneg %p74
        %p218 = pneg %p71
        %p219 = pneg %p95
        %p220 = pneg %p92
        %p221 = pneg %p116
        %p222 = pneg %p113
        %p223 = pneg %p142
        %p224 = pneg %p139
        %p225 = scmp.lt.s32.totalorder %s22, 1
        %s226 = scalar_select %p225, %s22, 1
        %s227 = smul.addr %s226, 16
        %s228 = smul.addr %s227, 8
        %s229 = scalar_lea.vmem %s4, %s228
        %p230 = scmp.lt.s32.totalorder %s22, 1
        %s231 = scalar_select %p230, %s22, 1
        %s232 = smul.addr %s231, 16
        %s233 = smul.addr %s232, 8
        %s234 = scalar_lea.vmem %s4, %s233
        %p235 = scmp.eq.s32.totalorder %s23, 0
        // Predicated region
        $region41: #{tpu_custom_call.1} parent=35 // pred_check
          %p236 = pneg %p235
        $region42: #{tpu_custom_call.1} parent=35 // pred_check_branch
          %238 = sbr.rel (%p236) target = $region44
        $region43: #{tpu_custom_call.1} parent=35 // pred_region
          %vm239 = vcmask 7168
          %240 = vst.msk [vmem:[#allocation2] sm:$0xff] %vm239, -1e+30
          %241 = vst.msk [vmem:[#allocation2 + $0x8] sm:$0xff] %vm239, -1e+30
          %242 = vst.msk [vmem:[#allocation2 + $0x10] sm:$0xff] %vm239, -1e+30
          %243 = vst.msk [vmem:[#allocation2 + $0x18] sm:$0xff] %vm239, -1e+30
          %244 = vst.msk [vmem:[#allocation2 + $0x20] sm:$0xff] %vm239, -1e+30
          %245 = vst.msk [vmem:[#allocation2 + $0x28] sm:$0xff] %vm239, -1e+30
          %246 = vst.msk [vmem:[#allocation2 + $0x30] sm:$0xff] %vm239, -1e+30
          %247 = vst.msk [vmem:[#allocation2 + $0x38] sm:$0xff] %vm239, -1e+30
          %248 = vst.msk [vmem:[#allocation3] sm:$0xff] %vm239, 0.0
          %249 = vst.msk [vmem:[#allocation3 + $0x8] sm:$0xff] %vm239, 0.0
          %250 = vst.msk [vmem:[#allocation3 + $0x10] sm:$0xff] %vm239, 0.0
          %251 = vst.msk [vmem:[#allocation3 + $0x18] sm:$0xff] %vm239, 0.0
          %252 = vst.msk [vmem:[#allocation3 + $0x20] sm:$0xff] %vm239, 0.0
          %253 = vst.msk [vmem:[#allocation3 + $0x28] sm:$0xff] %vm239, 0.0
          %254 = vst.msk [vmem:[#allocation3 + $0x30] sm:$0xff] %vm239, 0.0
          %255 = vst.msk [vmem:[#allocation3 + $0x38] sm:$0xff] %vm239, 0.0
          %256 = vst.msk [vmem:[#allocation4] sm:$0xff] %vm239, 0.0
          %257 = vst.msk [vmem:[#allocation4 + $0x8] sm:$0xff] %vm239, 0.0
          %258 = vst.msk [vmem:[#allocation4 + $0x10] sm:$0xff] %vm239, 0.0
          %259 = vst.msk [vmem:[#allocation4 + $0x18] sm:$0xff] %vm239, 0.0
          %260 = vst.msk [vmem:[#allocation4 + $0x20] sm:$0xff] %vm239, 0.0
          %261 = vst.msk [vmem:[#allocation4 + $0x28] sm:$0xff] %vm239, 0.0
          %262 = vst.msk [vmem:[#allocation4 + $0x30] sm:$0xff] %vm239, 0.0
          %263 = vst.msk [vmem:[#allocation4 + $0x38] sm:$0xff] %vm239, 0.0
          %264 = vst.msk [vmem:[#allocation5] sm:$0xff] %vm239, 0.0
          %265 = vst.msk [vmem:[#allocation5 + $0x8] sm:$0xff] %vm239, 0.0
          %266 = vst.msk [vmem:[#allocation5 + $0x10] sm:$0xff] %vm239, 0.0
          %267 = vst.msk [vmem:[#allocation5 + $0x18] sm:$0xff] %vm239, 0.0
          %268 = vst.msk [vmem:[#allocation5 + $0x20] sm:$0xff] %vm239, 0.0
          %269 = vst.msk [vmem:[#allocation5 + $0x28] sm:$0xff] %vm239, 0.0
          %270 = vst.msk [vmem:[#allocation5 + $0x30] sm:$0xff] %vm239, 0.0
          %271 = vst.msk [vmem:[#allocation5 + $0x38] sm:$0xff] %vm239, 0.0
        $region44: #{tpu_custom_call.1} parent=35 // pred_fallthru
          _
        %v272 = vld [vmem:[%s204] sm:$0xff]
        %v273 = vld [vmem:[%s204 + $0x8] sm:$0xff]
        %v274 = vld [vmem:[%s204 + $0x10] sm:$0xff]
        %v275 = vld [vmem:[%s204 + $0x18] sm:$0xff]
        %v276 = vld [vmem:[%s204 + $0x20] sm:$0xff]
        %v277 = vld [vmem:[%s204 + $0x28] sm:$0xff]
        %v278 = vld [vmem:[%s204 + $0x30] sm:$0xff]
        %v279 = vld [vmem:[%s204 + $0x38] sm:$0xff]
        %v280 = vld [vmem:[%s1] sm:$0xff]
        %v281 = vld [vmem:[%s1 + $0x8] sm:$0xff]
        %v282 = vld [vmem:[%s1 + $0x10] sm:$0xff]
        %v283 = vld [vmem:[%s1 + $0x18] sm:$0xff]
        %v284 = vld [vmem:[%s2] sm:$0xff]
        %v285 = vld [vmem:[%s2 + $0x8] sm:$0xff]
        %v286 = vld [vmem:[%s2 + $0x10] sm:$0xff]
        %v287 = vld [vmem:[%s2 + $0x18] sm:$0xff]
        %289 = vset.pattern.permute.xlu0 0
        %290 = vperm.xlu0 %289, %v284
        %v291 = vpop.permute.xlu0 %290
        %294 = vset.pattern.permute.xlu0 0
        %295 = vperm.xlu0 %294, %v285
        %v296 = vpop.permute.xlu0 %295
        %299 = vset.pattern.permute.xlu0 0
        %300 = vperm.xlu0 %299, %v286
        %v301 = vpop.permute.xlu0 %300
        %304 = vset.pattern.permute.xlu0 0
        %305 = vperm.xlu0 %304, %v287
        %v306 = vpop.permute.xlu0 %305
        %vm308 = vcmask 523264
        %v310 = vsel %vm308, %v280, 0
        %v313 = vsel %vm308, %v281, 0
        %v316 = vsel %vm308, %v282, 0
        %v319 = vsel %vm308, %v283, 0
        %321 = vmatpush.msra.mxu0 0.0
        %322 = vmatpush.msra.mxu0 0.0
        %323 = vmatpush.msra.mxu0 0.0
        %324 = vmatpush.msra.mxu0 0.0
        %325 = vmatpush.msra.mxu0 0.0
        %326 = vmatpush.msra.mxu0 0.0
        %327 = vmatpush.msra.mxu0 0.0
        %328 = vmatpush.msra.mxu0 0.0
        %329 = vmatpush.msra.mxu0 %v279
        %330 = vmatpush.msra.mxu0 %v278
        %331 = vmatpush.msra.mxu0 %v277
        %332 = vmatpush.msra.mxu0 %v276
        %333 = vmatpush.msra.mxu0 %v275
        %334 = vmatpush.msra.mxu0 %v274
        %335 = vmatpush.msra.mxu0 %v273
        %336 = vmatpush.msra.mxu0 %v272
        %337 = vmatmul.f32.gmra.mxu0 %v310
        %v338 = vpop.f32.mrf.mxu0
        %v339 = vadd.f32 %v291, %v338
        %340 = vmatmul.f32.gmra.mxu0 %v313
        %v341 = vpop.f32.mrf.mxu0
        %v342 = vadd.f32 %v296, %v341
        %343 = vmatmul.f32.gmra.mxu0 %v316
        %v344 = vpop.f32.mrf.mxu0
        %v345 = vadd.f32 %v301, %v344
        %346 = vmatmul.f32.gmra.mxu0 %v319
        %v347 = vpop.f32.mrf.mxu0
        %v348 = vadd.f32 %v306, %v347
        %349 = vdwg.mxu0
        %v350 = vtanh.pop %v339
        %v351 = vtanh.pop %v342
        %v352 = vtanh.pop %v345
        %v353 = vtanh.pop %v348
        %v354 = vld [vmem:[%s3] sm:$0xff]
        %v355 = vld [vmem:[%s3 + $0x8] sm:$0xff]
        %v356 = vld [vmem:[%s3 + $0x10] sm:$0xff]
        %v357 = vld [vmem:[%s3 + $0x18] sm:$0xff]
        %v358 = vld [vmem:[%s3 + $0x20] sm:$0xff]
        %v359 = vld [vmem:[%s3 + $0x28] sm:$0xff]
        %v360 = vld [vmem:[%s3 + $0x30] sm:$0xff]
        %v361 = vld [vmem:[%s3 + $0x38] sm:$0xff]
        %vm362 = vcmask 261120
        %v364 = vsel %vm362, %v354, 0
        %v367 = vsel %vm362, %v355, 0
        %v370 = vsel %vm362, %v356, 0
        %v373 = vsel %vm362, %v357, 0
        %v376 = vsel %vm362, %v358, 0
        %v379 = vsel %vm362, %v359, 0
        %v382 = vsel %vm362, %v360, 0
        %v385 = vsel %vm362, %v361, 0
        %387 = vmatpush.msra.mxu0 0.0
        %388 = vmatpush.msra.mxu0 0.0
        %389 = vmatpush.msra.mxu0 0.0
        %390 = vmatpush.msra.mxu0 0.0
        %391 = vmatpush.msra.mxu0 0.0
        %392 = vmatpush.msra.mxu0 0.0
        %393 = vmatpush.msra.mxu0 0.0
        %394 = vmatpush.msra.mxu0 0.0
        %395 = vmatpush.msra.mxu0 0.0
        %396 = vmatpush.msra.mxu0 0.0
        %397 = vmatpush.msra.mxu0 0.0
        %398 = vmatpush.msra.mxu0 0.0
        %399 = vmatpush.msra.mxu0 %v353
        %400 = vmatpush.msra.mxu0 %v352
        %401 = vmatpush.msra.mxu0 %v351
        %402 = vmatpush.msra.mxu0 %v350
        %403 = vmatmul.f32.gmra.mxu0 %v364
        %v404 = vpop.f32.mrf.mxu0
        %v405 = vadd.f32 0.0, %v404
        %406 = vmatmul.f32.gmra.mxu0 %v367
        %v407 = vpop.f32.mrf.mxu0
        %v408 = vadd.f32 0.0, %v407
        %409 = vmatmul.f32.gmra.mxu0 %v370
        %v410 = vpop.f32.mrf.mxu0
        %v411 = vadd.f32 0.0, %v410
        %412 = vmatmul.f32.gmra.mxu0 %v373
        %v413 = vpop.f32.mrf.mxu0
        %v414 = vadd.f32 0.0, %v413
        %415 = vmatmul.f32.gmra.mxu0 %v376
        %v416 = vpop.f32.mrf.mxu0
        %v417 = vadd.f32 0.0, %v416
        %418 = vmatmul.f32.gmra.mxu0 %v379
        %v419 = vpop.f32.mrf.mxu0
        %v420 = vadd.f32 0.0, %v419
        %421 = vmatmul.f32.gmra.mxu0 %v382
        %v422 = vpop.f32.mrf.mxu0
        %v423 = vadd.f32 0.0, %v422
        %424 = vmatmul.f32.gmra.mxu0 %v385
        %v425 = vpop.f32.mrf.mxu0
        %v426 = vadd.f32 0.0, %v425
        %427 = vdwg.mxu0
        %p428 = scmp.ne.s32.totalorder %s23, 1
        // Predicated region
        $region45: #{tpu_custom_call.1} parent=35 // pred_check
          %p429 = pneg %p428
        $region46: #{tpu_custom_call.1} parent=35 // pred_check_branch
          %431 = sbr.rel (%p429) target = $region48
        $region47: #{tpu_custom_call.1} parent=35 // pred_region
          %v432 = vld [vmem:[#allocation2] sm:$0xff]
          %v433 = vld [vmem:[#allocation2 + $0x8] sm:$0xff]
          %v434 = vld [vmem:[#allocation2 + $0x10] sm:$0xff]
          %v435 = vld [vmem:[#allocation2 + $0x18] sm:$0xff]
          %v436 = vld [vmem:[#allocation2 + $0x20] sm:$0xff]
          %v437 = vld [vmem:[#allocation2 + $0x28] sm:$0xff]
          %v438 = vld [vmem:[#allocation2 + $0x30] sm:$0xff]
          %v439 = vld [vmem:[#allocation2 + $0x38] sm:$0xff]
          %440 = vmax.xlane.f32.xlu0 %v405
          %v441 = vpop.xlane.xlu0 %440
          %442 = vmax.xlane.f32.xlu0 %v408
          %v443 = vpop.xlane.xlu0 %442
          %444 = vmax.xlane.f32.xlu0 %v411
          %v445 = vpop.xlane.xlu0 %444
          %446 = vmax.xlane.f32.xlu0 %v414
          %v447 = vpop.xlane.xlu0 %446
          %448 = vmax.xlane.f32.xlu0 %v417
          %v449 = vpop.xlane.xlu0 %448
          %450 = vmax.xlane.f32.xlu0 %v420
          %v451 = vpop.xlane.xlu0 %450
          %452 = vmax.xlane.f32.xlu0 %v423
          %v453 = vpop.xlane.xlu0 %452
          %454 = vmax.xlane.f32.xlu0 %v426
          %v455 = vpop.xlane.xlu0 %454
          %v456 = vmax.f32 %v432, %v441
          %v457 = vmax.f32 %v433, %v443
          %v458 = vmax.f32 %v434, %v445
          %v459 = vmax.f32 %v435, %v447
          %v460 = vmax.f32 %v436, %v449
          %v461 = vmax.f32 %v437, %v451
          %v462 = vmax.f32 %v438, %v453
          %v463 = vmax.f32 %v439, %v455
          %v464 = vsub.f32 %v432, %v456
          %v465 = vsub.f32 %v433, %v457
          %v466 = vsub.f32 %v434, %v458
          %v467 = vsub.f32 %v435, %v459
          %v468 = vsub.f32 %v436, %v460
          %v469 = vsub.f32 %v437, %v461
          %v470 = vsub.f32 %v438, %v462
          %v471 = vsub.f32 %v439, %v463
          %v472 = vmul.f32 %v464, 1.442695
          %v473 = vpow.pop %v472
          %v474 = vmul.f32 %v465, 1.442695
          %v475 = vpow.pop %v474
          %v476 = vmul.f32 %v466, 1.442695
          %v477 = vpow.pop %v476
          %v478 = vmul.f32 %v467, 1.442695
          %v479 = vpow.pop %v478
          %v480 = vmul.f32 %v468, 1.442695
          %v481 = vpow.pop %v480
          %v482 = vmul.f32 %v469, 1.442695
          %v483 = vpow.pop %v482
          %v484 = vmul.f32 %v470, 1.442695
          %v485 = vpow.pop %v484
          %v486 = vmul.f32 %v471, 1.442695
          %v487 = vpow.pop %v486
          %489 = vset.pattern.permute.xlu0 0
          %490 = vperm.xlu0 %489, %v456
          %v491 = vpop.permute.xlu0 %490
          %494 = vset.pattern.permute.xlu0 0
          %495 = vperm.xlu0 %494, %v457
          %v496 = vpop.permute.xlu0 %495
          %499 = vset.pattern.permute.xlu0 0
          %500 = vperm.xlu0 %499, %v458
          %v501 = vpop.permute.xlu0 %500
          %504 = vset.pattern.permute.xlu0 0
          %505 = vperm.xlu0 %504, %v459
          %v506 = vpop.permute.xlu0 %505
          %509 = vset.pattern.permute.xlu0 0
          %510 = vperm.xlu0 %509, %v460
          %v511 = vpop.permute.xlu0 %510
          %514 = vset.pattern.permute.xlu0 0
          %515 = vperm.xlu0 %514, %v461
          %v516 = vpop.permute.xlu0 %515
          %519 = vset.pattern.permute.xlu0 0
          %520 = vperm.xlu0 %519, %v462
          %v521 = vpop.permute.xlu0 %520
          %524 = vset.pattern.permute.xlu0 0
          %525 = vperm.xlu0 %524, %v463
          %v526 = vpop.permute.xlu0 %525
          %v528 = vsub.f32 %v405, %v491
          %v529 = vsub.f32 %v408, %v496
          %v530 = vsub.f32 %v411, %v501
          %v531 = vsub.f32 %v414, %v506
          %v532 = vsub.f32 %v417, %v511
          %v533 = vsub.f32 %v420, %v516
          %v534 = vsub.f32 %v423, %v521
          %v535 = vsub.f32 %v426, %v526
          %v536 = vmul.f32 %v528, 1.442695
          %v537 = vpow.pop %v536
          %v538 = vmul.f32 %v529, 1.442695
          %v539 = vpow.pop %v538
          %v540 = vmul.f32 %v530, 1.442695
          %v541 = vpow.pop %v540
          %v542 = vmul.f32 %v531, 1.442695
          %v543 = vpow.pop %v542
          %v544 = vmul.f32 %v532, 1.442695
          %v545 = vpow.pop %v544
          %v546 = vmul.f32 %v533, 1.442695
          %v547 = vpow.pop %v546
          %v548 = vmul.f32 %v534, 1.442695
          %v549 = vpow.pop %v548
          %v550 = vmul.f32 %v535, 1.442695
          %v551 = vpow.pop %v550
          %v552 = vmul.f32 %v537, %v272
          %v553 = vmul.f32 %v539, %v273
          %v554 = vmul.f32 %v541, %v274
          %v555 = vmul.f32 %v543, %v275
          %v556 = vmul.f32 %v545, %v276
          %v557 = vmul.f32 %v547, %v277
          %v558 = vmul.f32 %v549, %v278
          %v559 = vmul.f32 %v551, %v279
          %v560 = vld [vmem:[#allocation3] sm:$0xff]
          %v561 = vld [vmem:[#allocation3 + $0x8] sm:$0xff]
          %v562 = vld [vmem:[#allocation3 + $0x10] sm:$0xff]
          %v563 = vld [vmem:[#allocation3 + $0x18] sm:$0xff]
          %v564 = vld [vmem:[#allocation3 + $0x20] sm:$0xff]
          %v565 = vld [vmem:[#allocation3 + $0x28] sm:$0xff]
          %v566 = vld [vmem:[#allocation3 + $0x30] sm:$0xff]
          %v567 = vld [vmem:[#allocation3 + $0x38] sm:$0xff]
          %v568 = vmul.f32 %v473, %v560
          %v569 = vmul.f32 %v475, %v561
          %v570 = vmul.f32 %v477, %v562
          %v571 = vmul.f32 %v479, %v563
          %v572 = vmul.f32 %v481, %v564
          %v573 = vmul.f32 %v483, %v565
          %v574 = vmul.f32 %v485, %v566
          %v575 = vmul.f32 %v487, %v567
          %576 = vadd.xlane.f32.xlu0 %v537
          %v577 = vpop.xlane.xlu0 %576
          %578 = vadd.xlane.f32.xlu0 %v539
          %v579 = vpop.xlane.xlu0 %578
          %580 = vadd.xlane.f32.xlu0 %v541
          %v581 = vpop.xlane.xlu0 %580
          %582 = vadd.xlane.f32.xlu0 %v543
          %v583 = vpop.xlane.xlu0 %582
          %584 = vadd.xlane.f32.xlu0 %v545
          %v585 = vpop.xlane.xlu0 %584
          %586 = vadd.xlane.f32.xlu0 %v547
          %v587 = vpop.xlane.xlu0 %586
          %588 = vadd.xlane.f32.xlu0 %v549
          %v589 = vpop.xlane.xlu0 %588
          %590 = vadd.xlane.f32.xlu0 %v551
          %v591 = vpop.xlane.xlu0 %590
          %v592 = vadd.f32 %v568, %v577
          %v593 = vadd.f32 %v569, %v579
          %v594 = vadd.f32 %v570, %v581
          %v595 = vadd.f32 %v571, %v583
          %v596 = vadd.f32 %v572, %v585
          %v597 = vadd.f32 %v573, %v587
          %v598 = vadd.f32 %v574, %v589
          %v599 = vadd.f32 %v575, %v591
          %vm600 = vcmask 7168
          %601 = vst.msk [vmem:[#allocation3] sm:$0xff] %vm600, %v592
          %602 = vst.msk [vmem:[#allocation3 + $0x8] sm:$0xff] %vm600, %v593
          %603 = vst.msk [vmem:[#allocation3 + $0x10] sm:$0xff] %vm600, %v594
          %604 = vst.msk [vmem:[#allocation3 + $0x18] sm:$0xff] %vm600, %v595
          %605 = vst.msk [vmem:[#allocation3 + $0x20] sm:$0xff] %vm600, %v596
          %606 = vst.msk [vmem:[#allocation3 + $0x28] sm:$0xff] %vm600, %v597
          %607 = vst.msk [vmem:[#allocation3 + $0x30] sm:$0xff] %vm600, %v598
          %608 = vst.msk [vmem:[#allocation3 + $0x38] sm:$0xff] %vm600, %v599
          %v609 = vld [vmem:[#allocation4] sm:$0xff]
          %v610 = vld [vmem:[#allocation4 + $0x8] sm:$0xff]
          %v611 = vld [vmem:[#allocation4 + $0x10] sm:$0xff]
          %v612 = vld [vmem:[#allocation4 + $0x18] sm:$0xff]
          %v613 = vld [vmem:[#allocation4 + $0x20] sm:$0xff]
          %v614 = vld [vmem:[#allocation4 + $0x28] sm:$0xff]
          %v615 = vld [vmem:[#allocation4 + $0x30] sm:$0xff]
          %v616 = vld [vmem:[#allocation4 + $0x38] sm:$0xff]
          %v617 = vmul.f32 %v473, %v609
          %v618 = vmul.f32 %v475, %v610
          %v619 = vmul.f32 %v477, %v611
          %v620 = vmul.f32 %v479, %v612
          %v621 = vmul.f32 %v481, %v613
          %v622 = vmul.f32 %v483, %v614
          %v623 = vmul.f32 %v485, %v615
          %v624 = vmul.f32 %v487, %v616
          %625 = vadd.xlane.f32.xlu0 %v552
          %v626 = vpop.xlane.xlu0 %625
          %627 = vadd.xlane.f32.xlu0 %v553
          %v628 = vpop.xlane.xlu0 %627
          %629 = vadd.xlane.f32.xlu0 %v554
          %v630 = vpop.xlane.xlu0 %629
          %631 = vadd.xlane.f32.xlu0 %v555
          %v632 = vpop.xlane.xlu0 %631
          %633 = vadd.xlane.f32.xlu0 %v556
          %v634 = vpop.xlane.xlu0 %633
          %635 = vadd.xlane.f32.xlu0 %v557
          %v636 = vpop.xlane.xlu0 %635
          %637 = vadd.xlane.f32.xlu0 %v558
          %v638 = vpop.xlane.xlu0 %637
          %639 = vadd.xlane.f32.xlu0 %v559
          %v640 = vpop.xlane.xlu0 %639
          %v641 = vadd.f32 %v617, %v626
          %v642 = vadd.f32 %v618, %v628
          %v643 = vadd.f32 %v619, %v630
          %v644 = vadd.f32 %v620, %v632
          %v645 = vadd.f32 %v621, %v634
          %v646 = vadd.f32 %v622, %v636
          %v647 = vadd.f32 %v623, %v638
          %v648 = vadd.f32 %v624, %v640
          %649 = vst.msk [vmem:[#allocation4] sm:$0xff] %vm600, %v641
          %650 = vst.msk [vmem:[#allocation4 + $0x8] sm:$0xff] %vm600, %v642
          %651 = vst.msk [vmem:[#allocation4 + $0x10] sm:$0xff] %vm600, %v643
          %652 = vst.msk [vmem:[#allocation4 + $0x18] sm:$0xff] %vm600, %v644
          %653 = vst.msk [vmem:[#allocation4 + $0x20] sm:$0xff] %vm600, %v645
          %654 = vst.msk [vmem:[#allocation4 + $0x28] sm:$0xff] %vm600, %v646
          %655 = vst.msk [vmem:[#allocation4 + $0x30] sm:$0xff] %vm600, %v647
          %656 = vst.msk [vmem:[#allocation4 + $0x38] sm:$0xff] %vm600, %v648
          %v657 = vld [vmem:[#allocation5] sm:$0xff]
          %v658 = vld [vmem:[#allocation5 + $0x8] sm:$0xff]
          %v659 = vld [vmem:[#allocation5 + $0x10] sm:$0xff]
          %v660 = vld [vmem:[#allocation5 + $0x18] sm:$0xff]
          %v661 = vld [vmem:[#allocation5 + $0x20] sm:$0xff]
          %v662 = vld [vmem:[#allocation5 + $0x28] sm:$0xff]
          %v663 = vld [vmem:[#allocation5 + $0x30] sm:$0xff]
          %v664 = vld [vmem:[#allocation5 + $0x38] sm:$0xff]
          %v665 = vmul.f32 %v473, %v657
          %v666 = vmul.f32 %v475, %v658
          %v667 = vmul.f32 %v477, %v659
          %v668 = vmul.f32 %v479, %v660
          %v669 = vmul.f32 %v481, %v661
          %v670 = vmul.f32 %v483, %v662
          %v671 = vmul.f32 %v485, %v663
          %v672 = vmul.f32 %v487, %v664
          %v673 = vmul.f32 %v552, %v272
          %v674 = vmul.f32 %v553, %v273
          %v675 = vmul.f32 %v554, %v274
          %v676 = vmul.f32 %v555, %v275
          %v677 = vmul.f32 %v556, %v276
          %v678 = vmul.f32 %v557, %v277
          %v679 = vmul.f32 %v558, %v278
          %v680 = vmul.f32 %v559, %v279
          %681 = vadd.xlane.f32.xlu0 %v673
          %v682 = vpop.xlane.xlu0 %681
          %683 = vadd.xlane.f32.xlu0 %v674
          %v684 = vpop.xlane.xlu0 %683
          %685 = vadd.xlane.f32.xlu0 %v675
          %v686 = vpop.xlane.xlu0 %685
          %687 = vadd.xlane.f32.xlu0 %v676
          %v688 = vpop.xlane.xlu0 %687
          %689 = vadd.xlane.f32.xlu0 %v677
          %v690 = vpop.xlane.xlu0 %689
          %691 = vadd.xlane.f32.xlu0 %v678
          %v692 = vpop.xlane.xlu0 %691
          %693 = vadd.xlane.f32.xlu0 %v679
          %v694 = vpop.xlane.xlu0 %693
          %695 = vadd.xlane.f32.xlu0 %v680
          %v696 = vpop.xlane.xlu0 %695
          %v697 = vadd.f32 %v665, %v682
          %v698 = vadd.f32 %v666, %v684
          %v699 = vadd.f32 %v667, %v686
          %v700 = vadd.f32 %v668, %v688
          %v701 = vadd.f32 %v669, %v690
          %v702 = vadd.f32 %v670, %v692
          %v703 = vadd.f32 %v671, %v694
          %v704 = vadd.f32 %v672, %v696
          %705 = vst.msk [vmem:[#allocation5] sm:$0xff] %vm600, %v697
          %706 = vst.msk [vmem:[#allocation5 + $0x8] sm:$0xff] %vm600, %v698
          %707 = vst.msk [vmem:[#allocation5 + $0x10] sm:$0xff] %vm600, %v699
          %708 = vst.msk [vmem:[#allocation5 + $0x18] sm:$0xff] %vm600, %v700
          %709 = vst.msk [vmem:[#allocation5 + $0x20] sm:$0xff] %vm600, %v701
          %710 = vst.msk [vmem:[#allocation5 + $0x28] sm:$0xff] %vm600, %v702
          %711 = vst.msk [vmem:[#allocation5 + $0x30] sm:$0xff] %vm600, %v703
          %712 = vst.msk [vmem:[#allocation5 + $0x38] sm:$0xff] %vm600, %v704
          %713 = vst.msk [vmem:[#allocation2] sm:$0xff] %vm600, %v456
          %714 = vst.msk [vmem:[#allocation2 + $0x8] sm:$0xff] %vm600, %v457
          %715 = vst.msk [vmem:[#allocation2 + $0x10] sm:$0xff] %vm600, %v458
          %716 = vst.msk [vmem:[#allocation2 + $0x18] sm:$0xff] %vm600, %v459
          %717 = vst.msk [vmem:[#allocation2 + $0x20] sm:$0xff] %vm600, %v460
          %718 = vst.msk [vmem:[#allocation2 + $0x28] sm:$0xff] %vm600, %v461
          %719 = vst.msk [vmem:[#allocation2 + $0x30] sm:$0xff] %vm600, %v462
          %720 = vst.msk [vmem:[#allocation2 + $0x38] sm:$0xff] %vm600, %v463
        $region48: #{tpu_custom_call.1} parent=35 // pred_fallthru
          _
        %p721 = scmp.eq.s32.totalorder %s23, 1
        // Predicated region
        $region49: #{tpu_custom_call.1} parent=35 // pred_check
          %p722 = pneg %p721
        $region50: #{tpu_custom_call.1} parent=35 // pred_check_branch
          %724 = sbr.rel (%p722) target = $region52
        $region51: #{tpu_custom_call.1} parent=35 // pred_region
          %v725 = vlaneseq
          %v726 = vand.u32 %v725, 127
          %vm727 = vcmp.lt.s32.totalorder %v726, 72
          %v728 = vsel %vm727, 1, 0
          %vm729 = vcmp.eq.s32.totalorder %v728, 1
          %v730 = vsel %vm729, %v405, -1e+30
          %v731 = vsel %vm729, %v408, -1e+30
          %v732 = vsel %vm729, %v411, -1e+30
          %v733 = vsel %vm729, %v414, -1e+30
          %v734 = vsel %vm729, %v417, -1e+30
          %v735 = vsel %vm729, %v420, -1e+30
          %v736 = vsel %vm729, %v423, -1e+30
          %v737 = vsel %vm729, %v426, -1e+30
          %v738 = vld [vmem:[#allocation2] sm:$0xff]
          %v739 = vld [vmem:[#allocation2 + $0x8] sm:$0xff]
          %v740 = vld [vmem:[#allocation2 + $0x10] sm:$0xff]
          %v741 = vld [vmem:[#allocation2 + $0x18] sm:$0xff]
          %v742 = vld [vmem:[#allocation2 + $0x20] sm:$0xff]
          %v743 = vld [vmem:[#allocation2 + $0x28] sm:$0xff]
          %v744 = vld [vmem:[#allocation2 + $0x30] sm:$0xff]
          %v745 = vld [vmem:[#allocation2 + $0x38] sm:$0xff]
          %746 = vmax.xlane.f32.xlu0 %v730
          %v747 = vpop.xlane.xlu0 %746
          %748 = vmax.xlane.f32.xlu0 %v731
          %v749 = vpop.xlane.xlu0 %748
          %750 = vmax.xlane.f32.xlu0 %v732
          %v751 = vpop.xlane.xlu0 %750
          %752 = vmax.xlane.f32.xlu0 %v733
          %v753 = vpop.xlane.xlu0 %752
          %754 = vmax.xlane.f32.xlu0 %v734
          %v755 = vpop.xlane.xlu0 %754
          %756 = vmax.xlane.f32.xlu0 %v735
          %v757 = vpop.xlane.xlu0 %756
          %758 = vmax.xlane.f32.xlu0 %v736
          %v759 = vpop.xlane.xlu0 %758
          %760 = vmax.xlane.f32.xlu0 %v737
          %v761 = vpop.xlane.xlu0 %760
          %v762 = vmax.f32 %v738, %v747
          %v763 = vmax.f32 %v739, %v749
          %v764 = vmax.f32 %v740, %v751
          %v765 = vmax.f32 %v741, %v753
          %v766 = vmax.f32 %v742, %v755
          %v767 = vmax.f32 %v743, %v757
          %v768 = vmax.f32 %v744, %v759
          %v769 = vmax.f32 %v745, %v761
          %v770 = vsub.f32 %v738, %v762
          %v771 = vsub.f32 %v739, %v763
          %v772 = vsub.f32 %v740, %v764
          %v773 = vsub.f32 %v741, %v765
          %v774 = vsub.f32 %v742, %v766
          %v775 = vsub.f32 %v743, %v767
          %v776 = vsub.f32 %v744, %v768
          %v777 = vsub.f32 %v745, %v769
          %v778 = vmul.f32 %v770, 1.442695
          %v779 = vpow.pop %v778
          %v780 = vmul.f32 %v771, 1.442695
          %v781 = vpow.pop %v780
          %v782 = vmul.f32 %v772, 1.442695
          %v783 = vpow.pop %v782
          %v784 = vmul.f32 %v773, 1.442695
          %v785 = vpow.pop %v784
          %v786 = vmul.f32 %v774, 1.442695
          %v787 = vpow.pop %v786
          %v788 = vmul.f32 %v775, 1.442695
          %v789 = vpow.pop %v788
          %v790 = vmul.f32 %v776, 1.442695
          %v791 = vpow.pop %v790
          %v792 = vmul.f32 %v777, 1.442695
          %v793 = vpow.pop %v792
          %795 = vset.pattern.permute.xlu0 0
          %796 = vperm.xlu0 %795, %v762
          %v797 = vpop.permute.xlu0 %796
          %800 = vset.pattern.permute.xlu0 0
          %801 = vperm.xlu0 %800, %v763
          %v802 = vpop.permute.xlu0 %801
          %805 = vset.pattern.permute.xlu0 0
          %806 = vperm.xlu0 %805, %v764
          %v807 = vpop.permute.xlu0 %806
          %810 = vset.pattern.permute.xlu0 0
          %811 = vperm.xlu0 %810, %v765
          %v812 = vpop.permute.xlu0 %811
          %815 = vset.pattern.permute.xlu0 0
          %816 = vperm.xlu0 %815, %v766
          %v817 = vpop.permute.xlu0 %816
          %820 = vset.pattern.permute.xlu0 0
          %821 = vperm.xlu0 %820, %v767
          %v822 = vpop.permute.xlu0 %821
          %825 = vset.pattern.permute.xlu0 0
          %826 = vperm.xlu0 %825, %v768
          %v827 = vpop.permute.xlu0 %826
          %830 = vset.pattern.permute.xlu0 0
          %831 = vperm.xlu0 %830, %v769
          %v832 = vpop.permute.xlu0 %831
          %v834 = vsub.f32 %v730, %v797
          %v835 = vsub.f32 %v731, %v802
          %v836 = vsub.f32 %v732, %v807
          %v837 = vsub.f32 %v733, %v812
          %v838 = vsub.f32 %v734, %v817
          %v839 = vsub.f32 %v735, %v822
          %v840 = vsub.f32 %v736, %v827
          %v841 = vsub.f32 %v737, %v832
          %v842 = vmul.f32 %v834, 1.442695
          %v843 = vpow.pop %v842
          %v844 = vmul.f32 %v835, 1.442695
          %v845 = vpow.pop %v844
          %v846 = vmul.f32 %v836, 1.442695
          %v847 = vpow.pop %v846
          %v848 = vmul.f32 %v837, 1.442695
          %v849 = vpow.pop %v848
          %v850 = vmul.f32 %v838, 1.442695
          %v851 = vpow.pop %v850
          %v852 = vmul.f32 %v839, 1.442695
          %v853 = vpow.pop %v852
          %v854 = vmul.f32 %v840, 1.442695
          %v855 = vpow.pop %v854
          %v856 = vmul.f32 %v841, 1.442695
          %v857 = vpow.pop %v856
          %v858 = vmul.f32 %v843, %v272
          %v859 = vmul.f32 %v845, %v273
          %v860 = vmul.f32 %v847, %v274
          %v861 = vmul.f32 %v849, %v275
          %v862 = vmul.f32 %v851, %v276
          %v863 = vmul.f32 %v853, %v277
          %v864 = vmul.f32 %v855, %v278
          %v865 = vmul.f32 %v857, %v279
          %v866 = vld [vmem:[#allocation3] sm:$0xff]
          %v867 = vld [vmem:[#allocation3 + $0x8] sm:$0xff]
          %v868 = vld [vmem:[#allocation3 + $0x10] sm:$0xff]
          %v869 = vld [vmem:[#allocation3 + $0x18] sm:$0xff]
          %v870 = vld [vmem:[#allocation3 + $0x20] sm:$0xff]
          %v871 = vld [vmem:[#allocation3 + $0x28] sm:$0xff]
          %v872 = vld [vmem:[#allocation3 + $0x30] sm:$0xff]
          %v873 = vld [vmem:[#allocation3 + $0x38] sm:$0xff]
          %v874 = vmul.f32 %v779, %v866
          %v875 = vmul.f32 %v781, %v867
          %v876 = vmul.f32 %v783, %v868
          %v877 = vmul.f32 %v785, %v869
          %v878 = vmul.f32 %v787, %v870
          %v879 = vmul.f32 %v789, %v871
          %v880 = vmul.f32 %v791, %v872
          %v881 = vmul.f32 %v793, %v873
          %882 = vadd.xlane.f32.xlu0 %v843
          %v883 = vpop.xlane.xlu0 %882
          %884 = vadd.xlane.f32.xlu0 %v845
          %v885 = vpop.xlane.xlu0 %884
          %886 = vadd.xlane.f32.xlu0 %v847
          %v887 = vpop.xlane.xlu0 %886
          %888 = vadd.xlane.f32.xlu0 %v849
          %v889 = vpop.xlane.xlu0 %888
          %890 = vadd.xlane.f32.xlu0 %v851
          %v891 = vpop.xlane.xlu0 %890
          %892 = vadd.xlane.f32.xlu0 %v853
          %v893 = vpop.xlane.xlu0 %892
          %894 = vadd.xlane.f32.xlu0 %v855
          %v895 = vpop.xlane.xlu0 %894
          %896 = vadd.xlane.f32.xlu0 %v857
          %v897 = vpop.xlane.xlu0 %896
          %v898 = vadd.f32 %v874, %v883
          %v899 = vadd.f32 %v875, %v885
          %v900 = vadd.f32 %v876, %v887
          %v901 = vadd.f32 %v877, %v889
          %v902 = vadd.f32 %v878, %v891
          %v903 = vadd.f32 %v879, %v893
          %v904 = vadd.f32 %v880, %v895
          %v905 = vadd.f32 %v881, %v897
          %vm906 = vcmask 7168
          %907 = vst.msk [vmem:[#allocation3] sm:$0xff] %vm906, %v898
          %908 = vst.msk [vmem:[#allocation3 + $0x8] sm:$0xff] %vm906, %v899
          %909 = vst.msk [vmem:[#allocation3 + $0x10] sm:$0xff] %vm906, %v900
          %910 = vst.msk [vmem:[#allocation3 + $0x18] sm:$0xff] %vm906, %v901
          %911 = vst.msk [vmem:[#allocation3 + $0x20] sm:$0xff] %vm906, %v902
          %912 = vst.msk [vmem:[#allocation3 + $0x28] sm:$0xff] %vm906, %v903
          %913 = vst.msk [vmem:[#allocation3 + $0x30] sm:$0xff] %vm906, %v904
          %914 = vst.msk [vmem:[#allocation3 + $0x38] sm:$0xff] %vm906, %v905
          %v915 = vld [vmem:[#allocation4] sm:$0xff]
          %v916 = vld [vmem:[#allocation4 + $0x8] sm:$0xff]
          %v917 = vld [vmem:[#allocation4 + $0x10] sm:$0xff]
          %v918 = vld [vmem:[#allocation4 + $0x18] sm:$0xff]
          %v919 = vld [vmem:[#allocation4 + $0x20] sm:$0xff]
          %v920 = vld [vmem:[#allocation4 + $0x28] sm:$0xff]
          %v921 = vld [vmem:[#allocation4 + $0x30] sm:$0xff]
          %v922 = vld [vmem:[#allocation4 + $0x38] sm:$0xff]
          %v923 = vmul.f32 %v779, %v915
          %v924 = vmul.f32 %v781, %v916
          %v925 = vmul.f32 %v783, %v917
          %v926 = vmul.f32 %v785, %v918
          %v927 = vmul.f32 %v787, %v919
          %v928 = vmul.f32 %v789, %v920
          %v929 = vmul.f32 %v791, %v921
          %v930 = vmul.f32 %v793, %v922
          %931 = vadd.xlane.f32.xlu0 %v858
          %v932 = vpop.xlane.xlu0 %931
          %933 = vadd.xlane.f32.xlu0 %v859
          %v934 = vpop.xlane.xlu0 %933
          %935 = vadd.xlane.f32.xlu0 %v860
          %v936 = vpop.xlane.xlu0 %935
          %937 = vadd.xlane.f32.xlu0 %v861
          %v938 = vpop.xlane.xlu0 %937
          %939 = vadd.xlane.f32.xlu0 %v862
          %v940 = vpop.xlane.xlu0 %939
          %941 = vadd.xlane.f32.xlu0 %v863
          %v942 = vpop.xlane.xlu0 %941
          %943 = vadd.xlane.f32.xlu0 %v864
          %v944 = vpop.xlane.xlu0 %943
          %945 = vadd.xlane.f32.xlu0 %v865
          %v946 = vpop.xlane.xlu0 %945
          %v947 = vadd.f32 %v923, %v932
          %v948 = vadd.f32 %v924, %v934
          %v949 = vadd.f32 %v925, %v936
          %v950 = vadd.f32 %v926, %v938
          %v951 = vadd.f32 %v927, %v940
          %v952 = vadd.f32 %v928, %v942
          %v953 = vadd.f32 %v929, %v944
          %v954 = vadd.f32 %v930, %v946
          %955 = vst.msk [vmem:[#allocation4] sm:$0xff] %vm906, %v947
          %956 = vst.msk [vmem:[#allocation4 + $0x8] sm:$0xff] %vm906, %v948
          %957 = vst.msk [vmem:[#allocation4 + $0x10] sm:$0xff] %vm906, %v949
          %958 = vst.msk [vmem:[#allocation4 + $0x18] sm:$0xff] %vm906, %v950
          %959 = vst.msk [vmem:[#allocation4 + $0x20] sm:$0xff] %vm906, %v951
          %960 = vst.msk [vmem:[#allocation4 + $0x28] sm:$0xff] %vm906, %v952
          %961 = vst.msk [vmem:[#allocation4 + $0x30] sm:$0xff] %vm906, %v953
          %962 = vst.msk [vmem:[#allocation4 + $0x38] sm:$0xff] %vm906, %v954
          %v963 = vld [vmem:[#allocation5] sm:$0xff]
          %v964 = vld [vmem:[#allocation5 + $0x8] sm:$0xff]
          %v965 = vld [vmem:[#allocation5 + $0x10] sm:$0xff]
          %v966 = vld [vmem:[#allocation5 + $0x18] sm:$0xff]
          %v967 = vld [vmem:[#allocation5 + $0x20] sm:$0xff]
          %v968 = vld [vmem:[#allocation5 + $0x28] sm:$0xff]
          %v969 = vld [vmem:[#allocation5 + $0x30] sm:$0xff]
          %v970 = vld [vmem:[#allocation5 + $0x38] sm:$0xff]
          %v971 = vmul.f32 %v779, %v963
          %v972 = vmul.f32 %v781, %v964
          %v973 = vmul.f32 %v783, %v965
          %v974 = vmul.f32 %v785, %v966
          %v975 = vmul.f32 %v787, %v967
          %v976 = vmul.f32 %v789, %v968
          %v977 = vmul.f32 %v791, %v969
          %v978 = vmul.f32 %v793, %v970
          %v979 = vmul.f32 %v858, %v272
          %v980 = vmul.f32 %v859, %v273
          %v981 = vmul.f32 %v860, %v274
          %v982 = vmul.f32 %v861, %v275
          %v983 = vmul.f32 %v862, %v276
          %v984 = vmul.f32 %v863, %v277
          %v985 = vmul.f32 %v864, %v278
          %v986 = vmul.f32 %v865, %v279
          %987 = vadd.xlane.f32.xlu0 %v979
          %v988 = vpop.xlane.xlu0 %987
          %989 = vadd.xlane.f32.xlu0 %v980
          %v990 = vpop.xlane.xlu0 %989
          %991 = vadd.xlane.f32.xlu0 %v981
          %v992 = vpop.xlane.xlu0 %991
          %993 = vadd.xlane.f32.xlu0 %v982
          %v994 = vpop.xlane.xlu0 %993
          %995 = vadd.xlane.f32.xlu0 %v983
          %v996 = vpop.xlane.xlu0 %995
          %997 = vadd.xlane.f32.xlu0 %v984
          %v998 = vpop.xlane.xlu0 %997
          %999 = vadd.xlane.f32.xlu0 %v985
          %v1000 = vpop.xlane.xlu0 %999
          %1001 = vadd.xlane.f32.xlu0 %v986
          %v1002 = vpop.xlane.xlu0 %1001
          %v1003 = vadd.f32 %v971, %v988
          %v1004 = vadd.f32 %v972, %v990
          %v1005 = vadd.f32 %v973, %v992
          %v1006 = vadd.f32 %v974, %v994
          %v1007 = vadd.f32 %v975, %v996
          %v1008 = vadd.f32 %v976, %v998
          %v1009 = vadd.f32 %v977, %v1000
          %v1010 = vadd.f32 %v978, %v1002
          %1011 = vst.msk [vmem:[#allocation5] sm:$0xff] %vm906, %v1003
          %1012 = vst.msk [vmem:[#allocation5 + $0x8] sm:$0xff] %vm906, %v1004
          %1013 = vst.msk [vmem:[#allocation5 + $0x10] sm:$0xff] %vm906, %v1005
          %1014 = vst.msk [vmem:[#allocation5 + $0x18] sm:$0xff] %vm906, %v1006
          %1015 = vst.msk [vmem:[#allocation5 + $0x20] sm:$0xff] %vm906, %v1007
          %1016 = vst.msk [vmem:[#allocation5 + $0x28] sm:$0xff] %vm906, %v1008
          %1017 = vst.msk [vmem:[#allocation5 + $0x30] sm:$0xff] %vm906, %v1009
          %1018 = vst.msk [vmem:[#allocation5 + $0x38] sm:$0xff] %vm906, %v1010
          %1019 = vst.msk [vmem:[#allocation2] sm:$0xff] %vm906, %v762
          %1020 = vst.msk [vmem:[#allocation2 + $0x8] sm:$0xff] %vm906, %v763
          %1021 = vst.msk [vmem:[#allocation2 + $0x10] sm:$0xff] %vm906, %v764
          %1022 = vst.msk [vmem:[#allocation2 + $0x18] sm:$0xff] %vm906, %v765
          %1023 = vst.msk [vmem:[#allocation2 + $0x20] sm:$0xff] %vm906, %v766
          %1024 = vst.msk [vmem:[#allocation2 + $0x28] sm:$0xff] %vm906, %v767
          %1025 = vst.msk [vmem:[#allocation2 + $0x30] sm:$0xff] %vm906, %v768
          %1026 = vst.msk [vmem:[#allocation2 + $0x38] sm:$0xff] %vm906, %v769
          %v1027 = vld [vmem:[#allocation3] sm:$0xff]
          %v1028 = vld [vmem:[#allocation3 + $0x8] sm:$0xff]
          %v1029 = vld [vmem:[#allocation3 + $0x10] sm:$0xff]
          %v1030 = vld [vmem:[#allocation3 + $0x18] sm:$0xff]
          %v1031 = vld [vmem:[#allocation3 + $0x20] sm:$0xff]
          %v1032 = vld [vmem:[#allocation3 + $0x28] sm:$0xff]
          %v1033 = vld [vmem:[#allocation3 + $0x30] sm:$0xff]
          %v1034 = vld [vmem:[#allocation3 + $0x38] sm:$0xff]
          %v1035 = vrcp.pop %v1027
          %v1036 = vmul.f32 %v1027, %v1035
          %v1037 = vsub.f32 1.0, %v1036
          %v1038 = vmul.f32 %v1035, %v1037
          %v1039 = vadd.f32 %v1035, %v1038
          %vm1040 = vweird.f32 %v1027
          %vm1041 = vweird.f32 %v1035
          %vm1042 = vmor %vm1040, %vm1041
          %v1043 = vsel %vm1042, %v1035, %v1039
          %v1044 = vand.u32 2147483647, %v1027
          %vm1045 = vcmp.eq.f32.partialorder %v1044, 8.507059e+37
          %v1046 = vand.u32 %v1027, 2147483648
          %v1047 = vor.u32 1.1754944e-38, %v1046
          %v1048 = vsel %vm1045, %v1047, %v1043
          %v1049 = vmul.f32 1.0, %v1048
          %v1050 = vrcp.pop %v1028
          %v1051 = vmul.f32 %v1028, %v1050
          %v1052 = vsub.f32 1.0, %v1051
          %v1053 = vmul.f32 %v1050, %v1052
          %v1054 = vadd.f32 %v1050, %v1053
          %vm1055 = vweird.f32 %v1028
          %vm1056 = vweird.f32 %v1050
          %vm1057 = vmor %vm1055, %vm1056
          %v1058 = vsel %vm1057, %v1050, %v1054
          %v1059 = vand.u32 2147483647, %v1028
          %vm1060 = vcmp.eq.f32.partialorder %v1059, 8.507059e+37
          %v1061 = vand.u32 %v1028, 2147483648
          %v1062 = vor.u32 1.1754944e-38, %v1061
          %v1063 = vsel %vm1060, %v1062, %v1058
          %v1064 = vmul.f32 1.0, %v1063
          %v1065 = vrcp.pop %v1029
          %v1066 = vmul.f32 %v1029, %v1065
          %v1067 = vsub.f32 1.0, %v1066
          %v1068 = vmul.f32 %v1065, %v1067
          %v1069 = vadd.f32 %v1065, %v1068
          %vm1070 = vweird.f32 %v1029
          %vm1071 = vweird.f32 %v1065
          %vm1072 = vmor %vm1070, %vm1071
          %v1073 = vsel %vm1072, %v1065, %v1069
          %v1074 = vand.u32 2147483647, %v1029
          %vm1075 = vcmp.eq.f32.partialorder %v1074, 8.507059e+37
          %v1076 = vand.u32 %v1029, 2147483648
          %v1077 = vor.u32 1.1754944e-38, %v1076
          %v1078 = vsel %vm1075, %v1077, %v1073
          %v1079 = vmul.f32 1.0, %v1078
          %v1080 = vrcp.pop %v1030
          %v1081 = vmul.f32 %v1030, %v1080
          %v1082 = vsub.f32 1.0, %v1081
          %v1083 = vmul.f32 %v1080, %v1082
          %v1084 = vadd.f32 %v1080, %v1083
          %vm1085 = vweird.f32 %v1030
          %vm1086 = vweird.f32 %v1080
          %vm1087 = vmor %vm1085, %vm1086
          %v1088 = vsel %vm1087, %v1080, %v1084
          %v1089 = vand.u32 2147483647, %v1030
          %vm1090 = vcmp.eq.f32.partialorder %v1089, 8.507059e+37
          %v1091 = vand.u32 %v1030, 2147483648
          %v1092 = vor.u32 1.1754944e-38, %v1091
          %v1093 = vsel %vm1090, %v1092, %v1088
          %v1094 = vmul.f32 1.0, %v1093
          %v1095 = vrcp.pop %v1031
          %v1096 = vmul.f32 %v1031, %v1095
          %v1097 = vsub.f32 1.0, %v1096
          %v1098 = vmul.f32 %v1095, %v1097
          %v1099 = vadd.f32 %v1095, %v1098
          %vm1100 = vweird.f32 %v1031
          %vm1101 = vweird.f32 %v1095
          %vm1102 = vmor %vm1100, %vm1101
          %v1103 = vsel %vm1102, %v1095, %v1099
          %v1104 = vand.u32 2147483647, %v1031
          %vm1105 = vcmp.eq.f32.partialorder %v1104, 8.507059e+37
          %v1106 = vand.u32 %v1031, 2147483648
          %v1107 = vor.u32 1.1754944e-38, %v1106
          %v1108 = vsel %vm1105, %v1107, %v1103
          %v1109 = vmul.f32 1.0, %v1108
          %v1110 = vrcp.pop %v1032
          %v1111 = vmul.f32 %v1032, %v1110
          %v1112 = vsub.f32 1.0, %v1111
          %v1113 = vmul.f32 %v1110, %v1112
          %v1114 = vadd.f32 %v1110, %v1113
          %vm1115 = vweird.f32 %v1032
          %vm1116 = vweird.f32 %v1110
          %vm1117 = vmor %vm1115, %vm1116
          %v1118 = vsel %vm1117, %v1110, %v1114
          %v1119 = vand.u32 2147483647, %v1032
          %vm1120 = vcmp.eq.f32.partialorder %v1119, 8.507059e+37
          %v1121 = vand.u32 %v1032, 2147483648
          %v1122 = vor.u32 1.1754944e-38, %v1121
          %v1123 = vsel %vm1120, %v1122, %v1118
          %v1124 = vmul.f32 1.0, %v1123
          %v1125 = vrcp.pop %v1033
          %v1126 = vmul.f32 %v1033, %v1125
          %v1127 = vsub.f32 1.0, %v1126
          %v1128 = vmul.f32 %v1125, %v1127
          %v1129 = vadd.f32 %v1125, %v1128
          %vm1130 = vweird.f32 %v1033
          %vm1131 = vweird.f32 %v1125
          %vm1132 = vmor %vm1130, %vm1131
          %v1133 = vsel %vm1132, %v1125, %v1129
          %v1134 = vand.u32 2147483647, %v1033
          %vm1135 = vcmp.eq.f32.partialorder %v1134, 8.507059e+37
          %v1136 = vand.u32 %v1033, 2147483648
          %v1137 = vor.u32 1.1754944e-38, %v1136
          %v1138 = vsel %vm1135, %v1137, %v1133
          %v1139 = vmul.f32 1.0, %v1138
          %v1140 = vrcp.pop %v1034
          %v1141 = vmul.f32 %v1034, %v1140
          %v1142 = vsub.f32 1.0, %v1141
          %v1143 = vmul.f32 %v1140, %v1142
          %v1144 = vadd.f32 %v1140, %v1143
          %vm1145 = vweird.f32 %v1034
          %vm1146 = vweird.f32 %v1140
          %vm1147 = vmor %vm1145, %vm1146
          %v1148 = vsel %vm1147, %v1140, %v1144
          %v1149 = vand.u32 2147483647, %v1034
          %vm1150 = vcmp.eq.f32.partialorder %v1149, 8.507059e+37
          %v1151 = vand.u32 %v1034, 2147483648
          %v1152 = vor.u32 1.1754944e-38, %v1151
          %v1153 = vsel %vm1150, %v1152, %v1148
          %v1154 = vmul.f32 1.0, %v1153
          %v1155 = vld [vmem:[#allocation4] sm:$0xff]
          %v1156 = vld [vmem:[#allocation4 + $0x8] sm:$0xff]
          %v1157 = vld [vmem:[#allocation4 + $0x10] sm:$0xff]
          %v1158 = vld [vmem:[#allocation4 + $0x18] sm:$0xff]
          %v1159 = vld [vmem:[#allocation4 + $0x20] sm:$0xff]
          %v1160 = vld [vmem:[#allocation4 + $0x28] sm:$0xff]
          %v1161 = vld [vmem:[#allocation4 + $0x30] sm:$0xff]
          %v1162 = vld [vmem:[#allocation4 + $0x38] sm:$0xff]
          %v1163 = vmul.f32 %v1155, %v1049
          %v1164 = vmul.f32 %v1156, %v1064
          %v1165 = vmul.f32 %v1157, %v1079
          %v1166 = vmul.f32 %v1158, %v1094
          %v1167 = vmul.f32 %v1159, %v1109
          %v1168 = vmul.f32 %v1160, %v1124
          %v1169 = vmul.f32 %v1161, %v1139
          %v1170 = vmul.f32 %v1162, %v1154
          %v1171 = vld [vmem:[#allocation5] sm:$0xff]
          %v1172 = vld [vmem:[#allocation5 + $0x8] sm:$0xff]
          %v1173 = vld [vmem:[#allocation5 + $0x10] sm:$0xff]
          %v1174 = vld [vmem:[#allocation5 + $0x18] sm:$0xff]
          %v1175 = vld [vmem:[#allocation5 + $0x20] sm:$0xff]
          %v1176 = vld [vmem:[#allocation5 + $0x28] sm:$0xff]
          %v1177 = vld [vmem:[#allocation5 + $0x30] sm:$0xff]
          %v1178 = vld [vmem:[#allocation5 + $0x38] sm:$0xff]
          %v1179 = vmul.f32 %v1171, %v1049
          %v1180 = vmul.f32 %v1172, %v1064
          %v1181 = vmul.f32 %v1173, %v1079
          %v1182 = vmul.f32 %v1174, %v1094
          %v1183 = vmul.f32 %v1175, %v1109
          %v1184 = vmul.f32 %v1176, %v1124
          %v1185 = vmul.f32 %v1177, %v1139
          %v1186 = vmul.f32 %v1178, %v1154
          %v1187 = vmul.f32 %v1163, %v1163
          %v1188 = vmul.f32 %v1164, %v1164
          %v1189 = vmul.f32 %v1165, %v1165
          %v1190 = vmul.f32 %v1166, %v1166
          %v1191 = vmul.f32 %v1167, %v1167
          %v1192 = vmul.f32 %v1168, %v1168
          %v1193 = vmul.f32 %v1169, %v1169
          %v1194 = vmul.f32 %v1170, %v1170
          %v1195 = vsub.f32 %v1179, %v1187
          %v1196 = vsub.f32 %v1180, %v1188
          %v1197 = vsub.f32 %v1181, %v1189
          %v1198 = vsub.f32 %v1182, %v1190
          %v1199 = vsub.f32 %v1183, %v1191
          %v1200 = vsub.f32 %v1184, %v1192
          %v1201 = vsub.f32 %v1185, %v1193
          %v1202 = vsub.f32 %v1186, %v1194
          %v1203 = vmax.f32 %v1195, 1e-09
          %v1204 = vmax.f32 %v1196, 1e-09
          %v1205 = vmax.f32 %v1197, 1e-09
          %v1206 = vmax.f32 %v1198, 1e-09
          %v1207 = vmax.f32 %v1199, 1e-09
          %v1208 = vmax.f32 %v1200, 1e-09
          %v1209 = vmax.f32 %v1201, 1e-09
          %v1210 = vmax.f32 %v1202, 1e-09
          %v1211 = vrsqrt.pop %v1203
          %v1212 = vmul.f32 %v1211, %v1203
          %v1213 = vmul.f32 %v1212, %v1211
          %v1214 = vmul.f32 0.5, %v1213
          %v1215 = vsub.f32 1.5, %v1214
          %v1216 = vmul.f32 %v1211, %v1215
          %v1217 = vmul.f32 %v1203, %v1216
          %vm1218 = vcmp.eq.f32.partialorder %v1203, inf
          %v1219 = vsel %vm1218, %v1203, %v1217
          %vm1220 = vcmp.eq.f32.partialorder %v1203, 0.0
          %v1221 = vand.u32 %v1203, 2147483648
          %v1222 = vsel %vm1220, %v1221, %v1219
          %v1223 = vrsqrt.pop %v1204
          %v1224 = vmul.f32 %v1223, %v1204
          %v1225 = vmul.f32 %v1224, %v1223
          %v1226 = vmul.f32 0.5, %v1225
          %v1227 = vsub.f32 1.5, %v1226
          %v1228 = vmul.f32 %v1223, %v1227
          %v1229 = vmul.f32 %v1204, %v1228
          %vm1230 = vcmp.eq.f32.partialorder %v1204, inf
          %v1231 = vsel %vm1230, %v1204, %v1229
          %vm1232 = vcmp.eq.f32.partialorder %v1204, 0.0
          %v1233 = vand.u32 %v1204, 2147483648
          %v1234 = vsel %vm1232, %v1233, %v1231
          %v1235 = vrsqrt.pop %v1205
          %v1236 = vmul.f32 %v1235, %v1205
          %v1237 = vmul.f32 %v1236, %v1235
          %v1238 = vmul.f32 0.5, %v1237
          %v1239 = vsub.f32 1.5, %v1238
          %v1240 = vmul.f32 %v1235, %v1239
          %v1241 = vmul.f32 %v1205, %v1240
          %vm1242 = vcmp.eq.f32.partialorder %v1205, inf
          %v1243 = vsel %vm1242, %v1205, %v1241
          %vm1244 = vcmp.eq.f32.partialorder %v1205, 0.0
          %v1245 = vand.u32 %v1205, 2147483648
          %v1246 = vsel %vm1244, %v1245, %v1243
          %v1247 = vrsqrt.pop %v1206
          %v1248 = vmul.f32 %v1247, %v1206
          %v1249 = vmul.f32 %v1248, %v1247
          %v1250 = vmul.f32 0.5, %v1249
          %v1251 = vsub.f32 1.5, %v1250
          %v1252 = vmul.f32 %v1247, %v1251
          %v1253 = vmul.f32 %v1206, %v1252
          %vm1254 = vcmp.eq.f32.partialorder %v1206, inf
          %v1255 = vsel %vm1254, %v1206, %v1253
          %vm1256 = vcmp.eq.f32.partialorder %v1206, 0.0
          %v1257 = vand.u32 %v1206, 2147483648
          %v1258 = vsel %vm1256, %v1257, %v1255
          %v1259 = vrsqrt.pop %v1207
          %v1260 = vmul.f32 %v1259, %v1207
          %v1261 = vmul.f32 %v1260, %v1259
          %v1262 = vmul.f32 0.5, %v1261
          %v1263 = vsub.f32 1.5, %v1262
          %v1264 = vmul.f32 %v1259, %v1263
          %v1265 = vmul.f32 %v1207, %v1264
          %vm1266 = vcmp.eq.f32.partialorder %v1207, inf
          %v1267 = vsel %vm1266, %v1207, %v1265
          %vm1268 = vcmp.eq.f32.partialorder %v1207, 0.0
          %v1269 = vand.u32 %v1207, 2147483648
          %v1270 = vsel %vm1268, %v1269, %v1267
          %v1271 = vrsqrt.pop %v1208
          %v1272 = vmul.f32 %v1271, %v1208
          %v1273 = vmul.f32 %v1272, %v1271
          %v1274 = vmul.f32 0.5, %v1273
          %v1275 = vsub.f32 1.5, %v1274
          %v1276 = vmul.f32 %v1271, %v1275
          %v1277 = vmul.f32 %v1208, %v1276
          %vm1278 = vcmp.eq.f32.partialorder %v1208, inf
          %v1279 = vsel %vm1278, %v1208, %v1277
          %vm1280 = vcmp.eq.f32.partialorder %v1208, 0.0
          %v1281 = vand.u32 %v1208, 2147483648
          %v1282 = vsel %vm1280, %v1281, %v1279
          %v1283 = vrsqrt.pop %v1209
          %v1284 = vmul.f32 %v1283, %v1209
          %v1285 = vmul.f32 %v1284, %v1283
          %v1286 = vmul.f32 0.5, %v1285
          %v1287 = vsub.f32 1.5, %v1286
          %v1288 = vmul.f32 %v1283, %v1287
          %v1289 = vmul.f32 %v1209, %v1288
          %vm1290 = vcmp.eq.f32.partialorder %v1209, inf
          %v1291 = vsel %vm1290, %v1209, %v1289
          %vm1292 = vcmp.eq.f32.partialorder %v1209, 0.0
          %v1293 = vand.u32 %v1209, 2147483648
          %v1294 = vsel %vm1292, %v1293, %v1291
          %v1295 = vrsqrt.pop %v1210
          %v1296 = vmul.f32 %v1295, %v1210
          %v1297 = vmul.f32 %v1296, %v1295
          %v1298 = vmul.f32 0.5, %v1297
          %v1299 = vsub.f32 1.5, %v1298
          %v1300 = vmul.f32 %v1295, %v1299
          %v1301 = vmul.f32 %v1210, %v1300
          %vm1302 = vcmp.eq.f32.partialorder %v1210, inf
          %v1303 = vsel %vm1302, %v1210, %v1301
          %vm1304 = vcmp.eq.f32.partialorder %v1210, 0.0
          %v1305 = vand.u32 %v1210, 2147483648
          %v1306 = vsel %vm1304, %v1305, %v1303
          %1307 = vst.msk [vmem:[%s234] sm:$0xff] %vm906, %v1163
          %1308 = vst.msk [vmem:[%s234 + $0x8] sm:$0xff] %vm906, %v1164
          %1309 = vst.msk [vmem:[%s234 + $0x10] sm:$0xff] %vm906, %v1165
          %1310 = vst.msk [vmem:[%s234 + $0x18] sm:$0xff] %vm906, %v1166
          %1311 = vst.msk [vmem:[%s234 + $0x20] sm:$0xff] %vm906, %v1167
          %1312 = vst.msk [vmem:[%s234 + $0x28] sm:$0xff] %vm906, %v1168
          %1313 = vst.msk [vmem:[%s234 + $0x30] sm:$0xff] %vm906, %v1169
          %1314 = vst.msk [vmem:[%s234 + $0x38] sm:$0xff] %vm906, %v1170
          %1315 = vst.msk [vmem:[%s234 + $0x40] sm:$0xff] %vm906, %v1222
          %1316 = vst.msk [vmem:[%s234 + $0x48] sm:$0xff] %vm906, %v1234
          %1317 = vst.msk [vmem:[%s234 + $0x50] sm:$0xff] %vm906, %v1246
          %1318 = vst.msk [vmem:[%s234 + $0x58] sm:$0xff] %vm906, %v1258
          %1319 = vst.msk [vmem:[%s234 + $0x60] sm:$0xff] %vm906, %v1270
          %1320 = vst.msk [vmem:[%s234 + $0x68] sm:$0xff] %vm906, %v1282
          %1321 = vst.msk [vmem:[%s234 + $0x70] sm:$0xff] %vm906, %v1294
          %1322 = vst.msk [vmem:[%s234 + $0x78] sm:$0xff] %vm906, %v1306
        $region52: #{tpu_custom_call.1} parent=35 // pred_fallthru
          _
        %p1323 = scmp.lt.s32.totalorder %s22, 1
        %s1324 = scalar_select %p1323, %s22, 1
        %s1325 = smul.addr %s1324, 16
        %s1326 = smul.addr %s1325, 8
        %s1327 = scalar_lea.vmem %s4, %s1326
        // Predicated region
        $region53: #{tpu_custom_call.1} parent=35 // pred_check
          %p1328 = pneg %p139
        $region54: #{tpu_custom_call.1} parent=35 // pred_check_branch
          %1330 = sbr.rel (%p1328) target = $region56
        $region55: #{tpu_custom_call.1} parent=35 // pred_region
          _
        $region56: #{tpu_custom_call.1} parent=35 // pred_fallthru
          _
      $region36: #{tpu_custom_call.1} parent=5 // pred_fallthru
        _
      %p1331 = scmp.le.s32.totalorder 2, %s13
      // Predicated region
      $region57: #{tpu_custom_call.1} parent=5 // pred_check
        %p1332 = pneg %p1331
      $region58: #{tpu_custom_call.1} parent=5 // pred_check_branch
        %1334 = sbr.rel (%p1332) target = $region60
      $region59: #{tpu_custom_call.1} parent=5 // pred_region
        %s1335 = ssub.s32 %s13, 2
        // Predicated region
        $region61: #{tpu_custom_call.1} parent=59 // pred_check
          %p1336 = pneg %p145
        $region62: #{tpu_custom_call.1} parent=59 // pred_check_branch
          %1338 = sbr.rel (%p1336) target = $region64
        $region63: #{tpu_custom_call.1} parent=59 // pred_region
          %p1339 = scmp.lt.s32.totalorder %s24, 1
          %s1340 = scalar_select %p1339, %s24, 1
          %s1341 = smul.addr %s1340, 16
          %s1342 = smul.addr %s1341, 8
          %s1343 = scalar_lea.vmem %s4, %s1342
        $region64: #{tpu_custom_call.1} parent=59 // pred_fallthru
          _
      $region60: #{tpu_custom_call.1} parent=5 // pred_fallthru
        _
    $region6: #{tpu_custom_call.1} parent=1 // loop_footer
      %s17 = sadd.s32 1, %s13
    $region7: #{tpu_custom_call.1} parent=1 // loop_footer_branch
      %12 = sbr.rel target = $region3
    $region8: #{tpu_custom_call.1} parent=1 // loop_exit
      _
    %1344 = vsyncpa [#allocation7], 1
    %s1345 = scalar_lea.sflag [#allocation7], 1
    %1346 = vsyncpa %s1345, 1

</llo_original>
